<compile_context>
chip_gen: v7x
topology: tpu7x:2x2x1
jax: 0.10.0
libtpu: 0.0.40
codegen_flags: <defaults>
</compile_context>

<pallas_src>
import functools

import jax
import jax.numpy as jnp
from jax import lax
from jax.experimental import pallas as pl
from jax.experimental.pallas import tpu as pltpu


def _round_up(x, m):
    return ((x + m - 1) // m) * m


def _cdiv(a, b):
    return -(-a // b)


def _phys_vmem_bytes():
    """Physical VMEM per TensorCore; conservative 64 MiB (v7x) fallback."""
    try:
        info = pltpu.get_tpu_info()
        for attr in ("vmem_capacity_bytes", "vmem_size_bytes", "vmem_bytes"):
            v = getattr(info, attr, None)
            if v:
                return int(v)
    except Exception:
        pass
    return 64 * 1024 * 1024


def _pack_gate_blocks(w, h, hp):
    """Reorder PyTorch LSTM gate blocks [i,f,g,o] -> [i,f,o,g] and zero-pad each
    per-gate block from h to hp rows.  w: (4h, ...) -> (4hp, ...)."""
    shp = w.shape
    w4 = w.reshape((4, h) + shp[1:])
    w4 = w4[jnp.array([0, 1, 3, 2])]          # i, f, o, g
    pad = [(0, 0)] * w4.ndim
    pad[1] = (0, hp - h)
    w4 = jnp.pad(w4, pad)
    return w4.reshape((4 * hp,) + shp[1:])


def _lstm_recurrence_kernel(gx_ref, whh_ref, h0_ref, c0_ref,
                            out_ref, hn_ref, cn_ref,
                            h_sc, c_sc,
                            *, hp, t_chunk, rem_steps, unroll):
    """Sequential LSTM recurrence over one (batch-chunk, time-chunk) block.

    gx_ref : (Tc, Bb, 4*Hp) bf16  precomputed x@W_ih + b (time-major chunk)
    whh_ref: (Hp, 4*Hp)     bf16  recurrent weights (VMEM resident)
    h0/c0  : (Bb, Hp)       f32   initial state for this batch chunk
    out_ref: (Tc, Bb, Hp)   bf16  per-step hidden states (time-major chunk)
    hn/cn  : (Bb, Hp)       f32   final state (resident across the T axis)
    h_sc/c_sc : f32 VMEM scratch carrying h/c across time chunks.
    """
    t_id = pl.program_id(1)

    @pl.when(t_id == 0)
    def _init():
        h_sc[...] = h0_ref[...]
        c_sc[...] = c0_ref[...]

    whh = whh_ref[...]                                        # (Hp, 4Hp) bf16

    def step(tt, carry):
        h, c = carry                                          # (Bb, Hp) f32
        # Recurrent projection on the MXU: bf16 operands, f32 accumulation;
        # the streamed gate chunk is bf16, upcast and added in f32.
        g = gx_ref[tt].astype(jnp.float32) + jnp.dot(
            h.astype(jnp.bfloat16), whh, preferred_element_type=jnp.float32)
        # Packed gate order [i, f, o, g]: sigmoid(x) = 0.5*tanh(0.5*x) + 0.5
        # (1 EUP op/elem instead of exp+reciprocal) over a contiguous 3*Hp
        # slab, one tanh over the last Hp slab (all slices 128-lane aligned).
        sig = 0.5 * jnp.tanh(0.5 * g[:, 0:3 * hp]) + 0.5
        i_g = sig[:, 0 * hp:1 * hp]
        f_g = sig[:, 1 * hp:2 * hp]
        o_g = sig[:, 2 * hp:3 * hp]
        g_g = jnp.tanh(g[:, 3 * hp:4 * hp])
        c_new = f_g * c + i_g * g_g
        h_new = o_g * jnp.tanh(c_new)
        out_ref[tt] = h_new.astype(out_ref.dtype)             # bf16 store
        return h_new, c_new

    def _run(n_steps):
        def body():
            h_fin, c_fin = lax.fori_loop(0, n_steps, step,
                                         (h_sc[...], c_sc[...]),
                                         unroll=unroll)
            h_sc[...] = h_fin
            c_sc[...] = c_fin
        return body

    if rem_steps == 0:
        _run(t_chunk)()
    else:
        # Last time chunk is partial: run only the valid steps (static trip
        # count) instead of running padded steps and masking their results.
        last_t = pl.num_programs(1) - 1
        pl.when(t_id != last_t)(_run(t_chunk))
        pl.when(t_id == last_t)(_run(rem_steps))

    hn_ref[...] = h_sc[...]
    cn_ref[...] = c_sc[...]


def recurrent_block_forward(inputs, hidden, params):
    """Pallas implementation of RecurrentBlock.forward (LSTM defaults).

    inputs : (B, T, I) float32  (batch_first, like the PyTorch module)
    hidden : (h0, c0), each (n_layers=1, B, H)
    params : {'w_ih': (4H, I), 'w_hh': (4H, H), 'b_ih': (4H,), 'b_hh': (4H,)}
    Returns {'out': (B, T, H), 'aux': {'hidden': (h_n, c_n)}}.
    """
    h0_full, c0_full = hidden
    B, T, I = inputs.shape
    H = params["w_hh"].shape[1]

    f32, bf16 = jnp.float32, jnp.bfloat16

    # ---- generation-aware VMEM budget --------------------------------------
    phys_vmem = _phys_vmem_bytes()             # 64 MiB/TC on v7x, 128 MiB v5e/v6e
    budget = int(phys_vmem * 0.62)             # tile-sizing target
    vmem_limit = min(int(phys_vmem * 0.75), 100 * 1024 * 1024)

    # ---- padded / chunked geometry -----------------------------------------
    Hp = _round_up(H, 128)                     # per-gate lane alignment
    Bp0 = _round_up(B, 8)                      # sublane alignment
    if Bp0 <= 128:
        # Small/medium batch: one chunk (fills up to 128 MXU rows).
        # TODO(synk): with n_b == 1 one v7x TensorCore idles; fine for small B.
        Bb = Bp0
    else:
        # Large batch: 128-row chunks fill v5e MXU rows and keep n_b >= 2 so
        # the "parallel" axis can feed both v7x TensorCores; 256 rows once the
        # batch is big enough (v6e/v7x MXUs are 256 rows wide).
        Bb = 256 if Bp0 >= 512 else 128
    Bp = _round_up(Bp0, Bb)

    def _vmem_est(tc, bb):
        return (2 * tc * bb * 4 * Hp * 2       # gates chunk, bf16, double-buffered
                + 2 * tc * bb * Hp * 2         # out chunk, bf16, double-buffered
                + 2 * Hp * 4 * Hp * 2          # W_hh bf16 (+ headroom)
                + 12 * bb * Hp * 4)            # h0/c0/hn/cn blocks + h/c scratch

    def _pick_tc(bb):
        per_tc = 2 * bb * 4 * Hp * 2 + 2 * bb * Hp * 2
        fixed = 2 * Hp * 4 * Hp * 2 + 12 * bb * Hp * 4
        tc = (budget - fixed) // per_tc if budget > fixed else 1
        return int(max(1, min(T, tc, 1024)))

    Tc = _pick_tc(Bb)
    while Bb > 8 and _vmem_est(max(Tc, 8), Bb) > budget:
        Bb //= 2
        Bp = _round_up(Bp0, Bb)
        Tc = _pick_tc(Bb)
    n_b = Bp // Bb
    n_t = _cdiv(T, Tc)
    T_pad = n_t * Tc
    rem_steps = T % Tc                         # 0 => every time chunk is full

    # ---- parameter packing (gate reorder + per-gate padding) ---------------
    wih_p = jnp.transpose(_pack_gate_blocks(params["w_ih"].astype(f32), H, Hp))  # (I, 4Hp)
    whh_p = jnp.transpose(_pack_gate_blocks(params["w_hh"].astype(f32), H, Hp))  # (H, 4Hp)
    whh_p = jnp.pad(whh_p, ((0, Hp - H), (0, 0))).astype(bf16)                   # (Hp, 4Hp)
    bias_p = _pack_gate_blocks((params["b_ih"] + params["b_hh"]).astype(f32),
                               H, Hp)                                            # (4Hp,)

    # ---- hoisted input projection: pad the SMALL input first, then one big
    # matmul emits the padded time-major gate stream directly (bf16). ---------
    x = jnp.pad(inputs.astype(bf16), ((0, Bp - B), (0, T_pad - T), (0, 0)))
    gates_x = (jnp.einsum("bti,ig->tbg", x, wih_p.astype(bf16),
                          preferred_element_type=f32)
               + bias_p[None, None, :]).astype(bf16)           # (T_pad, Bp, 4Hp)

    # ---- initial state (zero padding keeps padded lanes inert) -------------
    h0 = jnp.pad(h0_full[0].astype(f32), ((0, Bp - B), (0, Hp - H)))
    c0 = jnp.pad(c0_full[0].astype(f32), ((0, Bp - B), (0, Hp - H)))

    # ---- unroll heuristic, derated by vreg pressure of the f32 gate slab ----
    g_vregs = (Bb * 4 * Hp * 4) // 4096
    if g_vregs <= 8:
        unroll = True if Tc <= 16 else 4
    elif g_vregs <= 16:
        unroll = 2
    else:
        unroll = 1

    kernel = functools.partial(
        _lstm_recurrence_kernel, hp=Hp, t_chunk=Tc, rem_steps=rem_steps,
        unroll=unroll)

    cost = pl.CostEstimate(
        flops=int(2 * T * Bp * Hp * 4 * Hp),
        transcendentals=int(5 * T * Bp * Hp),      # 3 sigmoid-as-tanh + 2 tanh
        bytes_accessed=int(T_pad * Bp * 4 * Hp * 2 + T_pad * Bp * Hp * 2
                           + Hp * 4 * Hp * 2 + 6 * Bp * Hp * 4))

    out_tm, h_n, c_n = pl.pallas_call(
        kernel,
        out_shape=(
            jax.ShapeDtypeStruct((T_pad, Bp, Hp), bf16),  # per-step hidden (time-major)
            jax.ShapeDtypeStruct((Bp, Hp), f32),          # h_n
            jax.ShapeDtypeStruct((Bp, Hp), f32),          # c_n
        ),
        grid_spec=pltpu.PrefetchScalarGridSpec(
            num_scalar_prefetch=0,
            grid=(n_b, n_t),
            in_specs=[
                pl.BlockSpec((Tc, Bb, 4 * Hp), lambda b, t: (t, b, 0)),  # gates_x
                pl.BlockSpec((Hp, 4 * Hp), lambda b, t: (0, 0)),         # W_hh (resident)
                pl.BlockSpec((Bb, Hp), lambda b, t: (b, 0)),             # h0
                pl.BlockSpec((Bb, Hp), lambda b, t: (b, 0)),             # c0
            ],
            out_specs=(
                pl.BlockSpec((Tc, Bb, Hp), lambda b, t: (t, b, 0)),      # out
                pl.BlockSpec((Bb, Hp), lambda b, t: (b, 0)),             # h_n
                pl.BlockSpec((Bb, Hp), lambda b, t: (b, 0)),             # c_n
            ),
            scratch_shapes=[
                pltpu.VMEM((Bb, Hp), f32),   # h carry
                pltpu.VMEM((Bb, Hp), f32),   # c carry
            ],
        ),
        compiler_params=pltpu.CompilerParams(
            dimension_semantics=("parallel", "arbitrary"),
            vmem_limit_bytes=int(vmem_limit)),
        cost_estimate=cost,
    )(gates_x, whh_p, h0, c0)

    # Un-pad + return to the caller's batch-first f32 layout.
    # TODO(synk): downstream consumers that accept time-major bf16 output can
    # skip this transpose/upcast epilogue entirely (saves a full HBM pass).
    output = jnp.transpose(out_tm[:T, :B, :H], (1, 0, 2)).astype(f32)
    h_n = h_n[:B, :H][None]
    c_n = c_n[:B, :H][None]
    return {"out": output, "aux": {"hidden": (h_n, c_n)}}


def _lstm_reference(inputs, hidden, params):
    """Pure-JAX f32 reference (PyTorch nn.LSTM equations) for verification."""
    h = hidden[0][0]
    c = hidden[1][0]
    H = params["w_hh"].shape[1]
    wih_t = params["w_ih"].T
    whh_t = params["w_hh"].T
    bias = params["b_ih"] + params["b_hh"]
    outs = []
    for t in range(inputs.shape[1]):
        gates = inputs[:, t, :] @ wih_t + h @ whh_t + bias
        i_g = jax.nn.sigmoid(gates[:, 0 * H:1 * H])
        f_g = jax.nn.sigmoid(gates[:, 1 * H:2 * H])
        g_g = jnp.tanh(gates[:, 2 * H:3 * H])
        o_g = jax.nn.sigmoid(gates[:, 3 * H:4 * H])
        c = f_g * c + i_g * g_g
        h = o_g * jnp.tanh(c)
        outs.append(h)
    return jnp.stack(outs, axis=1), h[None], c[None]


if __name__ == "__main__":
    # Small shapes consistent with the module: batch=2, seq=8, input=16, hidden=32
    B, T, I, H = 2, 8, 16, 32

    key = jax.random.PRNGKey(0)
    kx, kh, kc, kwih, kwhh, kbih, kbhh = jax.random.split(key, 7)

    scale = 1.0 / float(H) ** 0.5  # mimic PyTorch uniform(-1/sqrt(H), 1/sqrt(H))
    inputs = jax.random.normal(kx, (B, T, I), dtype=jnp.float32)
    params = {
        "w_ih": jax.random.uniform(kwih, (4 * H, I), jnp.float32, -scale, scale),
        "w_hh": jax.random.uniform(kwhh, (4 * H, H), jnp.float32, -scale, scale),
        "b_ih": jax.random.uniform(kbih, (4 * H,), jnp.float32, -scale, scale),
        "b_hh": jax.random.uniform(kbhh, (4 * H,), jnp.float32, -scale, scale),
    }
    # forward() accepts any provided hidden; use small random h0/c0 to exercise
    # the state path (init_hidden() would give zeros of the same shape).
    h0 = 0.1 * jax.random.normal(kh, (1, B, H), jnp.float32)
    c0 = 0.1 * jax.random.normal(kc, (1, B, H), jnp.float32)

    fwd = jax.jit(recurrent_block_forward)
    resp = fwd(inputs, (h0, c0), params)
    jax.block_until_ready(resp["out"])

    # Verify against the pure-JAX f32 reference (bf16 MXU operands / bf16 output
    # stream -> looser tolerance; h/c carry stays f32 inside the kernel).
    ref_out, ref_hn, ref_cn = _lstm_reference(inputs, (h0, c0), params)
    assert jnp.allclose(resp["out"], ref_out, atol=2e-2, rtol=2e-2)
    assert jnp.allclose(resp["aux"]["hidden"][0], ref_hn, atol=2e-2, rtol=2e-2)
    assert jnp.allclose(resp["aux"]["hidden"][1], ref_cn, atol=2e-2, rtol=2e-2)

    print("KERNEL_OK")
</pallas_src>

<mosaic_0001>
module attributes {stable_mosaic.version = 11 : i64} {
  func.func @_lstm_recurrence_kernel(%arg0: i32, %arg1: i32, %arg2: memref<8x8x512xbf16, #tpu.memory_space<vmem>>, %arg3: memref<128x512xbf16, #tpu.memory_space<vmem>>, %arg4: memref<8x128xf32, #tpu.memory_space<vmem>>, %arg5: memref<8x128xf32, #tpu.memory_space<vmem>>, %arg6: memref<8x8x128xbf16, #tpu.memory_space<vmem>>, %arg7: memref<8x128xf32, #tpu.memory_space<vmem>>, %arg8: memref<8x128xf32, #tpu.memory_space<vmem>>, %arg9: memref<8x128xf32, #tpu.memory_space<vmem>>, %arg10: memref<8x128xf32, #tpu.memory_space<vmem>>) attributes {dimension_semantics = [#tpu.dimension_semantics<parallel>, #tpu.dimension_semantics<arbitrary>], iteration_bounds = array<i64: 1, 1>, scalar_prefetch = 0 : i64, scratch_operands = 2 : i64, tpu.core_type = #tpu.core_type<tc>, window_params = [{transform_indices = @transform_0, window_bounds = array<i64: 8, 8, 512>}, {pipeline_mode = #tpu.pipeline_mode<synchronous>, transform_indices = @transform_1, window_bounds = array<i64: 128, 512>}, {transform_indices = @transform_2, window_bounds = array<i64: 8, 128>}, {transform_indices = @transform_3, window_bounds = array<i64: 8, 128>}, {transform_indices = @transform_4, window_bounds = array<i64: 8, 8, 128>}, {transform_indices = @transform_5, window_bounds = array<i64: 8, 128>}, {transform_indices = @transform_6, window_bounds = array<i64: 8, 128>}]} {
    %c0_i32 = arith.constant 0 : i32
    %0 = arith.cmpi eq, %arg1, %c0_i32 : i32
    %1 = arith.extui %0 : i1 to i32
    %c0_i32_0 = arith.constant 0 : i32
    %2 = arith.cmpi ne, %1, %c0_i32_0 : i32
    scf.if %2 {
      %c0_82 = arith.constant 0 : index
      %c0_83 = arith.constant 0 : index
      %252 = vector.load %arg4[%c0_82, %c0_83] : memref<8x128xf32, #tpu.memory_space<vmem>>, vector<8x128xf32>
      %c0_84 = arith.constant 0 : index
      %c0_85 = arith.constant 0 : index
      %253 = vector.load %arg9[%c0_84, %c0_85] : memref<8x128xf32, #tpu.memory_space<vmem>>, vector<8x128xf32>
      tpu.vector_store %arg9[%c0_84, %c0_85], %252 {strides = array<i32>} : memref<8x128xf32, #tpu.memory_space<vmem>>, vector<8x128xf32>,
      %c0_86 = arith.constant 0 : index
      %c0_87 = arith.constant 0 : index
      %254 = vector.load %arg5[%c0_86, %c0_87] : memref<8x128xf32, #tpu.memory_space<vmem>>, vector<8x128xf32>
      %c0_88 = arith.constant 0 : index
      %c0_89 = arith.constant 0 : index
      %255 = vector.load %arg10[%c0_88, %c0_89] : memref<8x128xf32, #tpu.memory_space<vmem>>, vector<8x128xf32>
      tpu.vector_store %arg10[%c0_88, %c0_89], %254 {strides = array<i32>} : memref<8x128xf32, #tpu.memory_space<vmem>>, vector<8x128xf32>,
    } else {
    }
    %c0 = arith.constant 0 : index
    %c0_1 = arith.constant 0 : index
    %3 = vector.load %arg3[%c0, %c0_1] : memref<128x512xbf16, #tpu.memory_space<vmem>>, vector<128x512xbf16>
    %c0_2 = arith.constant 0 : index
    %c0_3 = arith.constant 0 : index
    %4 = vector.load %arg9[%c0_2, %c0_3] : memref<8x128xf32, #tpu.memory_space<vmem>>, vector<8x128xf32>
    %c0_4 = arith.constant 0 : index
    %c0_5 = arith.constant 0 : index
    %5 = vector.load %arg10[%c0_4, %c0_5] : memref<8x128xf32, #tpu.memory_space<vmem>>, vector<8x128xf32>
    %c0_i32_6 = arith.constant 0 : i32
    %6 = arith.index_cast %c0_i32_6 : i32 to index
    %c0_7 = arith.constant 0 : index
    %c0_8 = arith.constant 0 : index
    %7 = vector.load %arg2[%6, %c0_7, %c0_8] : memref<8x8x512xbf16, #tpu.memory_space<vmem>>, vector<1x8x512xbf16>
    %8 = vector.shape_cast %7 : vector<1x8x512xbf16> to vector<8x512xbf16>
    %9 = arith.extf %8 : vector<8x512xbf16> to vector<8x512xf32>
    %10 = arith.truncf %4 : vector<8x128xf32> to vector<8x128xbf16>
    %cst = arith.constant dense<0.000000e+00> : vector<8x512xf32>
    %11 = tpu.matmul %10, %3, %cst {dimension_numbers = #tpu.dot_dimension_numbers<[1], [0], [0], [1], [0, 0, 1, 1], [], []>} : vector<8x128xbf16>, vector<128x512xbf16>, vector<8x512xf32> -> vector<8x512xf32>
    %12 = arith.addf %9, %11 : vector<8x512xf32>
    %13 = vector.extract_strided_slice %12 {offsets = [0, 0], sizes = [8, 384], strides = [1, 1]} : vector<8x512xf32> to vector<8x384xf32>
    %cst_9 = arith.constant 5.000000e-01 : f32
    %14 = vector.broadcast %cst_9 : f32 to vector<8x384xf32>
    %15 = arith.mulf %14, %13 : vector<8x384xf32>
    %16 = math.tanh %15 : vector<8x384xf32>
    %cst_10 = arith.constant 5.000000e-01 : f32
    %17 = vector.broadcast %cst_10 : f32 to vector<8x384xf32>
    %18 = arith.mulf %17, %16 : vector<8x384xf32>
    %cst_11 = arith.constant 5.000000e-01 : f32
    %19 = vector.broadcast %cst_11 : f32 to vector<8x384xf32>
    %20 = arith.addf %18, %19 : vector<8x384xf32>
    %21 = vector.extract_strided_slice %20 {offsets = [0, 0], sizes = [8, 128], strides = [1, 1]} : vector<8x384xf32> to vector<8x128xf32>
    %22 = vector.extract_strided_slice %20 {offsets = [0, 128], sizes = [8, 128], strides = [1, 1]} : vector<8x384xf32> to vector<8x128xf32>
    %23 = vector.extract_strided_slice %20 {offsets = [0, 256], sizes = [8, 128], strides = [1, 1]} : vector<8x384xf32> to vector<8x128xf32>
    %24 = vector.extract_strided_slice %12 {offsets = [0, 384], sizes = [8, 128], strides = [1, 1]} : vector<8x512xf32> to vector<8x128xf32>
    %25 = math.tanh %24 : vector<8x128xf32>
    %26 = arith.mulf %22, %5 : vector<8x128xf32>
    %27 = arith.mulf %21, %25 : vector<8x128xf32>
    %28 = arith.addf %26, %27 : vector<8x128xf32>
    %29 = math.tanh %28 : vector<8x128xf32>
    %30 = arith.mulf %23, %29 : vector<8x128xf32>
    %31 = arith.truncf %30 : vector<8x128xf32> to vector<8x128xbf16>
    %32 = arith.index_cast %c0_i32_6 : i32 to index
    %c0_12 = arith.constant 0 : index
    %c0_13 = arith.constant 0 : index
    %33 = vector.load %arg6[%32, %c0_12, %c0_13] : memref<8x8x128xbf16, #tpu.memory_space<vmem>>, vector<1x8x128xbf16>
    %34 = vector.shape_cast %33 : vector<1x8x128xbf16> to vector<8x128xbf16>
    %35 = vector.shape_cast %31 : vector<8x128xbf16> to vector<1x8x128xbf16>
    tpu.vector_store %arg6[%32, %c0_12, %c0_13], %35 {strides = array<i32>} : memref<8x8x128xbf16, #tpu.memory_space<vmem>>, vector<1x8x128xbf16>,
    %c1_i32 = arith.constant 1 : i32
    %36 = arith.index_cast %c1_i32 : i32 to index
    %c0_14 = arith.constant 0 : index
    %c0_15 = arith.constant 0 : index
    %37 = vector.load %arg2[%36, %c0_14, %c0_15] : memref<8x8x512xbf16, #tpu.memory_space<vmem>>, vector<1x8x512xbf16>
    %38 = vector.shape_cast %37 : vector<1x8x512xbf16> to vector<8x512xbf16>
    %39 = arith.extf %38 : vector<8x512xbf16> to vector<8x512xf32>
    %40 = arith.truncf %30 : vector<8x128xf32> to vector<8x128xbf16>
    %cst_16 = arith.constant dense<0.000000e+00> : vector<8x512xf32>
    %41 = tpu.matmul %40, %3, %cst_16 {dimension_numbers = #tpu.dot_dimension_numbers<[1], [0], [0], [1], [0, 0, 1, 1], [], []>} : vector<8x128xbf16>, vector<128x512xbf16>, vector<8x512xf32> -> vector<8x512xf32>
    %42 = arith.addf %39, %41 : vector<8x512xf32>
    %43 = vector.extract_strided_slice %42 {offsets = [0, 0], sizes = [8, 384], strides = [1, 1]} : vector<8x512xf32> to vector<8x384xf32>
    %cst_17 = arith.constant 5.000000e-01 : f32
    %44 = vector.broadcast %cst_17 : f32 to vector<8x384xf32>
    %45 = arith.mulf %44, %43 : vector<8x384xf32>
    %46 = math.tanh %45 : vector<8x384xf32>
    %cst_18 = arith.constant 5.000000e-01 : f32
    %47 = vector.broadcast %cst_18 : f32 to vector<8x384xf32>
    %48 = arith.mulf %47, %46 : vector<8x384xf32>
    %cst_19 = arith.constant 5.000000e-01 : f32
    %49 = vector.broadcast %cst_19 : f32 to vector<8x384xf32>
    %50 = arith.addf %48, %49 : vector<8x384xf32>
    %51 = vector.extract_strided_slice %50 {offsets = [0, 0], sizes = [8, 128], strides = [1, 1]} : vector<8x384xf32> to vector<8x128xf32>
    %52 = vector.extract_strided_slice %50 {offsets = [0, 128], sizes = [8, 128], strides = [1, 1]} : vector<8x384xf32> to vector<8x128xf32>
    %53 = vector.extract_strided_slice %50 {offsets = [0, 256], sizes = [8, 128], strides = [1, 1]} : vector<8x384xf32> to vector<8x128xf32>
    %54 = vector.extract_strided_slice %42 {offsets = [0, 384], sizes = [8, 128], strides = [1, 1]} : vector<8x512xf32> to vector<8x128xf32>
    %55 = math.tanh %54 : vector<8x128xf32>
    %56 = arith.mulf %52, %28 : vector<8x128xf32>
    %57 = arith.mulf %51, %55 : vector<8x128xf32>
    %58 = arith.addf %56, %57 : vector<8x128xf32>
    %59 = math.tanh %58 : vector<8x128xf32>
    %60 = arith.mulf %53, %59 : vector<8x128xf32>
    %61 = arith.truncf %60 : vector<8x128xf32> to vector<8x128xbf16>
    %62 = arith.index_cast %c1_i32 : i32 to index
    %c0_20 = arith.constant 0 : index
    %c0_21 = arith.constant 0 : index
    %63 = vector.load %arg6[%62, %c0_20, %c0_21] : memref<8x8x128xbf16, #tpu.memory_space<vmem>>, vector<1x8x128xbf16>
    %64 = vector.shape_cast %63 : vector<1x8x128xbf16> to vector<8x128xbf16>
    %65 = vector.shape_cast %61 : vector<8x128xbf16> to vector<1x8x128xbf16>
    tpu.vector_store %arg6[%62, %c0_20, %c0_21], %65 {strides = array<i32>} : memref<8x8x128xbf16, #tpu.memory_space<vmem>>, vector<1x8x128xbf16>,
    %c2_i32 = arith.constant 2 : i32
    %66 = arith.index_cast %c2_i32 : i32 to index
    %c0_22 = arith.constant 0 : index
    %c0_23 = arith.constant 0 : index
    %67 = vector.load %arg2[%66, %c0_22, %c0_23] : memref<8x8x512xbf16, #tpu.memory_space<vmem>>, vector<1x8x512xbf16>
    %68 = vector.shape_cast %67 : vector<1x8x512xbf16> to vector<8x512xbf16>
    %69 = arith.extf %68 : vector<8x512xbf16> to vector<8x512xf32>
    %70 = arith.truncf %60 : vector<8x128xf32> to vector<8x128xbf16>
    %cst_24 = arith.constant dense<0.000000e+00> : vector<8x512xf32>
    %71 = tpu.matmul %70, %3, %cst_24 {dimension_numbers = #tpu.dot_dimension_numbers<[1], [0], [0], [1], [0, 0, 1, 1], [], []>} : vector<8x128xbf16>, vector<128x512xbf16>, vector<8x512xf32> -> vector<8x512xf32>
    %72 = arith.addf %69, %71 : vector<8x512xf32>
    %73 = vector.extract_strided_slice %72 {offsets = [0, 0], sizes = [8, 384], strides = [1, 1]} : vector<8x512xf32> to vector<8x384xf32>
    %cst_25 = arith.constant 5.000000e-01 : f32
    %74 = vector.broadcast %cst_25 : f32 to vector<8x384xf32>
    %75 = arith.mulf %74, %73 : vector<8x384xf32>
    %76 = math.tanh %75 : vector<8x384xf32>
    %cst_26 = arith.constant 5.000000e-01 : f32
    %77 = vector.broadcast %cst_26 : f32 to vector<8x384xf32>
    %78 = arith.mulf %77, %76 : vector<8x384xf32>
    %cst_27 = arith.constant 5.000000e-01 : f32
    %79 = vector.broadcast %cst_27 : f32 to vector<8x384xf32>
    %80 = arith.addf %78, %79 : vector<8x384xf32>
    %81 = vector.extract_strided_slice %80 {offsets = [0, 0], sizes = [8, 128], strides = [1, 1]} : vector<8x384xf32> to vector<8x128xf32>
    %82 = vector.extract_strided_slice %80 {offsets = [0, 128], sizes = [8, 128], strides = [1, 1]} : vector<8x384xf32> to vector<8x128xf32>
    %83 = vector.extract_strided_slice %80 {offsets = [0, 256], sizes = [8, 128], strides = [1, 1]} : vector<8x384xf32> to vector<8x128xf32>
    %84 = vector.extract_strided_slice %72 {offsets = [0, 384], sizes = [8, 128], strides = [1, 1]} : vector<8x512xf32> to vector<8x128xf32>
    %85 = math.tanh %84 : vector<8x128xf32>
    %86 = arith.mulf %82, %58 : vector<8x128xf32>
    %87 = arith.mulf %81, %85 : vector<8x128xf32>
    %88 = arith.addf %86, %87 : vector<8x128xf32>
    %89 = math.tanh %88 : vector<8x128xf32>
    %90 = arith.mulf %83, %89 : vector<8x128xf32>
    %91 = arith.truncf %90 : vector<8x128xf32> to vector<8x128xbf16>
    %92 = arith.index_cast %c2_i32 : i32 to index
    %c0_28 = arith.constant 0 : index
    %c0_29 = arith.constant 0 : index
    %93 = vector.load %arg6[%92, %c0_28, %c0_29] : memref<8x8x128xbf16, #tpu.memory_space<vmem>>, vector<1x8x128xbf16>
    %94 = vector.shape_cast %93 : vector<1x8x128xbf16> to vector<8x128xbf16>
    %95 = vector.shape_cast %91 : vector<8x128xbf16> to vector<1x8x128xbf16>
    tpu.vector_store %arg6[%92, %c0_28, %c0_29], %95 {strides = array<i32>} : memref<8x8x128xbf16, #tpu.memory_space<vmem>>, vector<1x8x128xbf16>,
    %c3_i32 = arith.constant 3 : i32
    %96 = arith.index_cast %c3_i32 : i32 to index
    %c0_30 = arith.constant 0 : index
    %c0_31 = arith.constant 0 : index
    %97 = vector.load %arg2[%96, %c0_30, %c0_31] : memref<8x8x512xbf16, #tpu.memory_space<vmem>>, vector<1x8x512xbf16>
    %98 = vector.shape_cast %97 : vector<1x8x512xbf16> to vector<8x512xbf16>
    %99 = arith.extf %98 : vector<8x512xbf16> to vector<8x512xf32>
    %100 = arith.truncf %90 : vector<8x128xf32> to vector<8x128xbf16>
    %cst_32 = arith.constant dense<0.000000e+00> : vector<8x512xf32>
    %101 = tpu.matmul %100, %3, %cst_32 {dimension_numbers = #tpu.dot_dimension_numbers<[1], [0], [0], [1], [0, 0, 1, 1], [], []>} : vector<8x128xbf16>, vector<128x512xbf16>, vector<8x512xf32> -> vector<8x512xf32>
    %102 = arith.addf %99, %101 : vector<8x512xf32>
    %103 = vector.extract_strided_slice %102 {offsets = [0, 0], sizes = [8, 384], strides = [1, 1]} : vector<8x512xf32> to vector<8x384xf32>
    %cst_33 = arith.constant 5.000000e-01 : f32
    %104 = vector.broadcast %cst_33 : f32 to vector<8x384xf32>
    %105 = arith.mulf %104, %103 : vector<8x384xf32>
    %106 = math.tanh %105 : vector<8x384xf32>
    %cst_34 = arith.constant 5.000000e-01 : f32
    %107 = vector.broadcast %cst_34 : f32 to vector<8x384xf32>
    %108 = arith.mulf %107, %106 : vector<8x384xf32>
    %cst_35 = arith.constant 5.000000e-01 : f32
    %109 = vector.broadcast %cst_35 : f32 to vector<8x384xf32>
    %110 = arith.addf %108, %109 : vector<8x384xf32>
    %111 = vector.extract_strided_slice %110 {offsets = [0, 0], sizes = [8, 128], strides = [1, 1]} : vector<8x384xf32> to vector<8x128xf32>
    %112 = vector.extract_strided_slice %110 {offsets = [0, 128], sizes = [8, 128], strides = [1, 1]} : vector<8x384xf32> to vector<8x128xf32>
    %113 = vector.extract_strided_slice %110 {offsets = [0, 256], sizes = [8, 128], strides = [1, 1]} : vector<8x384xf32> to vector<8x128xf32>
    %114 = vector.extract_strided_slice %102 {offsets = [0, 384], sizes = [8, 128], strides = [1, 1]} : vector<8x512xf32> to vector<8x128xf32>
    %115 = math.tanh %114 : vector<8x128xf32>
    %116 = arith.mulf %112, %88 : vector<8x128xf32>
    %117 = arith.mulf %111, %115 : vector<8x128xf32>
    %118 = arith.addf %116, %117 : vector<8x128xf32>
    %119 = math.tanh %118 : vector<8x128xf32>
    %120 = arith.mulf %113, %119 : vector<8x128xf32>
    %121 = arith.truncf %120 : vector<8x128xf32> to vector<8x128xbf16>
    %122 = arith.index_cast %c3_i32 : i32 to index
    %c0_36 = arith.constant 0 : index
    %c0_37 = arith.constant 0 : index
    %123 = vector.load %arg6[%122, %c0_36, %c0_37] : memref<8x8x128xbf16, #tpu.memory_space<vmem>>, vector<1x8x128xbf16>
    %124 = vector.shape_cast %123 : vector<1x8x128xbf16> to vector<8x128xbf16>
    %125 = vector.shape_cast %121 : vector<8x128xbf16> to vector<1x8x128xbf16>
    tpu.vector_store %arg6[%122, %c0_36, %c0_37], %125 {strides = array<i32>} : memref<8x8x128xbf16, #tpu.memory_space<vmem>>, vector<1x8x128xbf16>,
    %c4_i32 = arith.constant 4 : i32
    %126 = arith.index_cast %c4_i32 : i32 to index
    %c0_38 = arith.constant 0 : index
    %c0_39 = arith.constant 0 : index
    %127 = vector.load %arg2[%126, %c0_38, %c0_39] : memref<8x8x512xbf16, #tpu.memory_space<vmem>>, vector<1x8x512xbf16>
    %128 = vector.shape_cast %127 : vector<1x8x512xbf16> to vector<8x512xbf16>
    %129 = arith.extf %128 : vector<8x512xbf16> to vector<8x512xf32>
    %130 = arith.truncf %120 : vector<8x128xf32> to vector<8x128xbf16>
    %cst_40 = arith.constant dense<0.000000e+00> : vector<8x512xf32>
    %131 = tpu.matmul %130, %3, %cst_40 {dimension_numbers = #tpu.dot_dimension_numbers<[1], [0], [0], [1], [0, 0, 1, 1], [], []>} : vector<8x128xbf16>, vector<128x512xbf16>, vector<8x512xf32> -> vector<8x512xf32>
    %132 = arith.addf %129, %131 : vector<8x512xf32>
    %133 = vector.extract_strided_slice %132 {offsets = [0, 0], sizes = [8, 384], strides = [1, 1]} : vector<8x512xf32> to vector<8x384xf32>
    %cst_41 = arith.constant 5.000000e-01 : f32
    %134 = vector.broadcast %cst_41 : f32 to vector<8x384xf32>
    %135 = arith.mulf %134, %133 : vector<8x384xf32>
    %136 = math.tanh %135 : vector<8x384xf32>
    %cst_42 = arith.constant 5.000000e-01 : f32
    %137 = vector.broadcast %cst_42 : f32 to vector<8x384xf32>
    %138 = arith.mulf %137, %136 : vector<8x384xf32>
    %cst_43 = arith.constant 5.000000e-01 : f32
    %139 = vector.broadcast %cst_43 : f32 to vector<8x384xf32>
    %140 = arith.addf %138, %139 : vector<8x384xf32>
    %141 = vector.extract_strided_slice %140 {offsets = [0, 0], sizes = [8, 128], strides = [1, 1]} : vector<8x384xf32> to vector<8x128xf32>
    %142 = vector.extract_strided_slice %140 {offsets = [0, 128], sizes = [8, 128], strides = [1, 1]} : vector<8x384xf32> to vector<8x128xf32>
    %143 = vector.extract_strided_slice %140 {offsets = [0, 256], sizes = [8, 128], strides = [1, 1]} : vector<8x384xf32> to vector<8x128xf32>
    %144 = vector.extract_strided_slice %132 {offsets = [0, 384], sizes = [8, 128], strides = [1, 1]} : vector<8x512xf32> to vector<8x128xf32>
    %145 = math.tanh %144 : vector<8x128xf32>
    %146 = arith.mulf %142, %118 : vector<8x128xf32>
    %147 = arith.mulf %141, %145 : vector<8x128xf32>
    %148 = arith.addf %146, %147 : vector<8x128xf32>
    %149 = math.tanh %148 : vector<8x128xf32>
    %150 = arith.mulf %143, %149 : vector<8x128xf32>
    %151 = arith.truncf %150 : vector<8x128xf32> to vector<8x128xbf16>
    %152 = arith.index_cast %c4_i32 : i32 to index
    %c0_44 = arith.constant 0 : index
    %c0_45 = arith.constant 0 : index
    %153 = vector.load %arg6[%152, %c0_44, %c0_45] : memref<8x8x128xbf16, #tpu.memory_space<vmem>>, vector<1x8x128xbf16>
    %154 = vector.shape_cast %153 : vector<1x8x128xbf16> to vector<8x128xbf16>
    %155 = vector.shape_cast %151 : vector<8x128xbf16> to vector<1x8x128xbf16>
    tpu.vector_store %arg6[%152, %c0_44, %c0_45], %155 {strides = array<i32>} : memref<8x8x128xbf16, #tpu.memory_space<vmem>>, vector<1x8x128xbf16>,
    %c5_i32 = arith.constant 5 : i32
    %156 = arith.index_cast %c5_i32 : i32 to index
    %c0_46 = arith.constant 0 : index
    %c0_47 = arith.constant 0 : index
    %157 = vector.load %arg2[%156, %c0_46, %c0_47] : memref<8x8x512xbf16, #tpu.memory_space<vmem>>, vector<1x8x512xbf16>
    %158 = vector.shape_cast %157 : vector<1x8x512xbf16> to vector<8x512xbf16>
    %159 = arith.extf %158 : vector<8x512xbf16> to vector<8x512xf32>
    %160 = arith.truncf %150 : vector<8x128xf32> to vector<8x128xbf16>
    %cst_48 = arith.constant dense<0.000000e+00> : vector<8x512xf32>
    %161 = tpu.matmul %160, %3, %cst_48 {dimension_numbers = #tpu.dot_dimension_numbers<[1], [0], [0], [1], [0, 0, 1, 1], [], []>} : vector<8x128xbf16>, vector<128x512xbf16>, vector<8x512xf32> -> vector<8x512xf32>
    %162 = arith.addf %159, %161 : vector<8x512xf32>
    %163 = vector.extract_strided_slice %162 {offsets = [0, 0], sizes = [8, 384], strides = [1, 1]} : vector<8x512xf32> to vector<8x384xf32>
    %cst_49 = arith.constant 5.000000e-01 : f32
    %164 = vector.broadcast %cst_49 : f32 to vector<8x384xf32>
    %165 = arith.mulf %164, %163 : vector<8x384xf32>
    %166 = math.tanh %165 : vector<8x384xf32>
    %cst_50 = arith.constant 5.000000e-01 : f32
    %167 = vector.broadcast %cst_50 : f32 to vector<8x384xf32>
    %168 = arith.mulf %167, %166 : vector<8x384xf32>
    %cst_51 = arith.constant 5.000000e-01 : f32
    %169 = vector.broadcast %cst_51 : f32 to vector<8x384xf32>
    %170 = arith.addf %168, %169 : vector<8x384xf32>
    %171 = vector.extract_strided_slice %170 {offsets = [0, 0], sizes = [8, 128], strides = [1, 1]} : vector<8x384xf32> to vector<8x128xf32>
    %172 = vector.extract_strided_slice %170 {offsets = [0, 128], sizes = [8, 128], strides = [1, 1]} : vector<8x384xf32> to vector<8x128xf32>
    %173 = vector.extract_strided_slice %170 {offsets = [0, 256], sizes = [8, 128], strides = [1, 1]} : vector<8x384xf32> to vector<8x128xf32>
    %174 = vector.extract_strided_slice %162 {offsets = [0, 384], sizes = [8, 128], strides = [1, 1]} : vector<8x512xf32> to vector<8x128xf32>
    %175 = math.tanh %174 : vector<8x128xf32>
    %176 = arith.mulf %172, %148 : vector<8x128xf32>
    %177 = arith.mulf %171, %175 : vector<8x128xf32>
    %178 = arith.addf %176, %177 : vector<8x128xf32>
    %179 = math.tanh %178 : vector<8x128xf32>
    %180 = arith.mulf %173, %179 : vector<8x128xf32>
    %181 = arith.truncf %180 : vector<8x128xf32> to vector<8x128xbf16>
    %182 = arith.index_cast %c5_i32 : i32 to index
    %c0_52 = arith.constant 0 : index
    %c0_53 = arith.constant 0 : index
    %183 = vector.load %arg6[%182, %c0_52, %c0_53] : memref<8x8x128xbf16, #tpu.memory_space<vmem>>, vector<1x8x128xbf16>
    %184 = vector.shape_cast %183 : vector<1x8x128xbf16> to vector<8x128xbf16>
    %185 = vector.shape_cast %181 : vector<8x128xbf16> to vector<1x8x128xbf16>
    tpu.vector_store %arg6[%182, %c0_52, %c0_53], %185 {strides = array<i32>} : memref<8x8x128xbf16, #tpu.memory_space<vmem>>, vector<1x8x128xbf16>,
    %c6_i32 = arith.constant 6 : i32
    %186 = arith.index_cast %c6_i32 : i32 to index
    %c0_54 = arith.constant 0 : index
    %c0_55 = arith.constant 0 : index
    %187 = vector.load %arg2[%186, %c0_54, %c0_55] : memref<8x8x512xbf16, #tpu.memory_space<vmem>>, vector<1x8x512xbf16>
    %188 = vector.shape_cast %187 : vector<1x8x512xbf16> to vector<8x512xbf16>
    %189 = arith.extf %188 : vector<8x512xbf16> to vector<8x512xf32>
    %190 = arith.truncf %180 : vector<8x128xf32> to vector<8x128xbf16>
    %cst_56 = arith.constant dense<0.000000e+00> : vector<8x512xf32>
    %191 = tpu.matmul %190, %3, %cst_56 {dimension_numbers = #tpu.dot_dimension_numbers<[1], [0], [0], [1], [0, 0, 1, 1], [], []>} : vector<8x128xbf16>, vector<128x512xbf16>, vector<8x512xf32> -> vector<8x512xf32>
    %192 = arith.addf %189, %191 : vector<8x512xf32>
    %193 = vector.extract_strided_slice %192 {offsets = [0, 0], sizes = [8, 384], strides = [1, 1]} : vector<8x512xf32> to vector<8x384xf32>
    %cst_57 = arith.constant 5.000000e-01 : f32
    %194 = vector.broadcast %cst_57 : f32 to vector<8x384xf32>
    %195 = arith.mulf %194, %193 : vector<8x384xf32>
    %196 = math.tanh %195 : vector<8x384xf32>
    %cst_58 = arith.constant 5.000000e-01 : f32
    %197 = vector.broadcast %cst_58 : f32 to vector<8x384xf32>
    %198 = arith.mulf %197, %196 : vector<8x384xf32>
    %cst_59 = arith.constant 5.000000e-01 : f32
    %199 = vector.broadcast %cst_59 : f32 to vector<8x384xf32>
    %200 = arith.addf %198, %199 : vector<8x384xf32>
    %201 = vector.extract_strided_slice %200 {offsets = [0, 0], sizes = [8, 128], strides = [1, 1]} : vector<8x384xf32> to vector<8x128xf32>
    %202 = vector.extract_strided_slice %200 {offsets = [0, 128], sizes = [8, 128], strides = [1, 1]} : vector<8x384xf32> to vector<8x128xf32>
    %203 = vector.extract_strided_slice %200 {offsets = [0, 256], sizes = [8, 128], strides = [1, 1]} : vector<8x384xf32> to vector<8x128xf32>
    %204 = vector.extract_strided_slice %192 {offsets = [0, 384], sizes = [8, 128], strides = [1, 1]} : vector<8x512xf32> to vector<8x128xf32>
    %205 = math.tanh %204 : vector<8x128xf32>
    %206 = arith.mulf %202, %178 : vector<8x128xf32>
    %207 = arith.mulf %201, %205 : vector<8x128xf32>
    %208 = arith.addf %206, %207 : vector<8x128xf32>
    %209 = math.tanh %208 : vector<8x128xf32>
    %210 = arith.mulf %203, %209 : vector<8x128xf32>
    %211 = arith.truncf %210 : vector<8x128xf32> to vector<8x128xbf16>
    %212 = arith.index_cast %c6_i32 : i32 to index
    %c0_60 = arith.constant 0 : index
    %c0_61 = arith.constant 0 : index
    %213 = vector.load %arg6[%212, %c0_60, %c0_61] : memref<8x8x128xbf16, #tpu.memory_space<vmem>>, vector<1x8x128xbf16>
    %214 = vector.shape_cast %213 : vector<1x8x128xbf16> to vector<8x128xbf16>
    %215 = vector.shape_cast %211 : vector<8x128xbf16> to vector<1x8x128xbf16>
    tpu.vector_store %arg6[%212, %c0_60, %c0_61], %215 {strides = array<i32>} : memref<8x8x128xbf16, #tpu.memory_space<vmem>>, vector<1x8x128xbf16>,
    %c7_i32 = arith.constant 7 : i32
    %216 = arith.index_cast %c7_i32 : i32 to index
    %c0_62 = arith.constant 0 : index
    %c0_63 = arith.constant 0 : index
    %217 = vector.load %arg2[%216, %c0_62, %c0_63] : memref<8x8x512xbf16, #tpu.memory_space<vmem>>, vector<1x8x512xbf16>
    %218 = vector.shape_cast %217 : vector<1x8x512xbf16> to vector<8x512xbf16>
    %219 = arith.extf %218 : vector<8x512xbf16> to vector<8x512xf32>
    %220 = arith.truncf %210 : vector<8x128xf32> to vector<8x128xbf16>
    %cst_64 = arith.constant dense<0.000000e+00> : vector<8x512xf32>
    %221 = tpu.matmul %220, %3, %cst_64 {dimension_numbers = #tpu.dot_dimension_numbers<[1], [0], [0], [1], [0, 0, 1, 1], [], []>} : vector<8x128xbf16>, vector<128x512xbf16>, vector<8x512xf32> -> vector<8x512xf32>
    %222 = arith.addf %219, %221 : vector<8x512xf32>
    %223 = vector.extract_strided_slice %222 {offsets = [0, 0], sizes = [8, 384], strides = [1, 1]} : vector<8x512xf32> to vector<8x384xf32>
    %cst_65 = arith.constant 5.000000e-01 : f32
    %224 = vector.broadcast %cst_65 : f32 to vector<8x384xf32>
    %225 = arith.mulf %224, %223 : vector<8x384xf32>
    %226 = math.tanh %225 : vector<8x384xf32>
    %cst_66 = arith.constant 5.000000e-01 : f32
    %227 = vector.broadcast %cst_66 : f32 to vector<8x384xf32>
    %228 = arith.mulf %227, %226 : vector<8x384xf32>
    %cst_67 = arith.constant 5.000000e-01 : f32
    %229 = vector.broadcast %cst_67 : f32 to vector<8x384xf32>
    %230 = arith.addf %228, %229 : vector<8x384xf32>
    %231 = vector.extract_strided_slice %230 {offsets = [0, 0], sizes = [8, 128], strides = [1, 1]} : vector<8x384xf32> to vector<8x128xf32>
    %232 = vector.extract_strided_slice %230 {offsets = [0, 128], sizes = [8, 128], strides = [1, 1]} : vector<8x384xf32> to vector<8x128xf32>
    %233 = vector.extract_strided_slice %230 {offsets = [0, 256], sizes = [8, 128], strides = [1, 1]} : vector<8x384xf32> to vector<8x128xf32>
    %234 = vector.extract_strided_slice %222 {offsets = [0, 384], sizes = [8, 128], strides = [1, 1]} : vector<8x512xf32> to vector<8x128xf32>
    %235 = math.tanh %234 : vector<8x128xf32>
    %236 = arith.mulf %232, %208 : vector<8x128xf32>
    %237 = arith.mulf %231, %235 : vector<8x128xf32>
    %238 = arith.addf %236, %237 : vector<8x128xf32>
    %239 = math.tanh %238 : vector<8x128xf32>
    %240 = arith.mulf %233, %239 : vector<8x128xf32>
    %241 = arith.truncf %240 : vector<8x128xf32> to vector<8x128xbf16>
    %242 = arith.index_cast %c7_i32 : i32 to index
    %c0_68 = arith.constant 0 : index
    %c0_69 = arith.constant 0 : index
    %243 = vector.load %arg6[%242, %c0_68, %c0_69] : memref<8x8x128xbf16, #tpu.memory_space<vmem>>, vector<1x8x128xbf16>
    %244 = vector.shape_cast %243 : vector<1x8x128xbf16> to vector<8x128xbf16>
    %245 = vector.shape_cast %241 : vector<8x128xbf16> to vector<1x8x128xbf16>
    tpu.vector_store %arg6[%242, %c0_68, %c0_69], %245 {strides = array<i32>} : memref<8x8x128xbf16, #tpu.memory_space<vmem>>, vector<1x8x128xbf16>,
    %c8_i32 = arith.constant 8 : i32
    %c0_70 = arith.constant 0 : index
    %c0_71 = arith.constant 0 : index
    %246 = vector.load %arg9[%c0_70, %c0_71] : memref<8x128xf32, #tpu.memory_space<vmem>>, vector<8x128xf32>
    tpu.vector_store %arg9[%c0_70, %c0_71], %240 {strides = array<i32>} : memref<8x128xf32, #tpu.memory_space<vmem>>, vector<8x128xf32>,
    %c0_72 = arith.constant 0 : index
    %c0_73 = arith.constant 0 : index
    %247 = vector.load %arg10[%c0_72, %c0_73] : memref<8x128xf32, #tpu.memory_space<vmem>>, vector<8x128xf32>
    tpu.vector_store %arg10[%c0_72, %c0_73], %238 {strides = array<i32>} : memref<8x128xf32, #tpu.memory_space<vmem>>, vector<8x128xf32>,
    %c0_74 = arith.constant 0 : index
    %c0_75 = arith.constant 0 : index
    %248 = vector.load %arg9[%c0_74, %c0_75] : memref<8x128xf32, #tpu.memory_space<vmem>>, vector<8x128xf32>
    %c0_76 = arith.constant 0 : index
    %c0_77 = arith.constant 0 : index
    %249 = vector.load %arg7[%c0_76, %c0_77] : memref<8x128xf32, #tpu.memory_space<vmem>>, vector<8x128xf32>
    tpu.vector_store %arg7[%c0_76, %c0_77], %248 {strides = array<i32>} : memref<8x128xf32, #tpu.memory_space<vmem>>, vector<8x128xf32>,
    %c0_78 = arith.constant 0 : index
    %c0_79 = arith.constant 0 : index
    %250 = vector.load %arg10[%c0_78, %c0_79] : memref<8x128xf32, #tpu.memory_space<vmem>>, vector<8x128xf32>
    %c0_80 = arith.constant 0 : index
    %c0_81 = arith.constant 0 : index
    %251 = vector.load %arg8[%c0_80, %c0_81] : memref<8x128xf32, #tpu.memory_space<vmem>>, vector<8x128xf32>
    tpu.vector_store %arg8[%c0_80, %c0_81], %250 {strides = array<i32>} : memref<8x128xf32, #tpu.memory_space<vmem>>, vector<8x128xf32>,
    return
  }
  func.func @transform_0(%arg0: i32, %arg1: i32) -> (i32, i32, i32) {
    %c0_i32 = arith.constant 0 : i32
    %c0_i32_0 = arith.constant 0 : i32
    return %arg1, %arg0, %c0_i32 : i32, i32, i32
  }
  func.func @transform_1(%arg0: i32, %arg1: i32) -> (i32, i32) {
    %c0_i32 = arith.constant 0 : i32
    %c0_i32_0 = arith.constant 0 : i32
    %c0_i32_1 = arith.constant 0 : i32
    return %c0_i32, %c0_i32_0 : i32, i32
  }
  func.func @transform_2(%arg0: i32, %arg1: i32) -> (i32, i32) {
    %c0_i32 = arith.constant 0 : i32
    %c0_i32_0 = arith.constant 0 : i32
    return %arg0, %c0_i32 : i32, i32
  }
  func.func @transform_3(%arg0: i32, %arg1: i32) -> (i32, i32) {
    %c0_i32 = arith.constant 0 : i32
    %c0_i32_0 = arith.constant 0 : i32
    return %arg0, %c0_i32 : i32, i32
  }
  func.func @transform_4(%arg0: i32, %arg1: i32) -> (i32, i32, i32) {
    %c0_i32 = arith.constant 0 : i32
    %c0_i32_0 = arith.constant 0 : i32
    return %arg1, %arg0, %c0_i32 : i32, i32, i32
  }
  func.func @transform_5(%arg0: i32, %arg1: i32) -> (i32, i32) {
    %c0_i32 = arith.constant 0 : i32
    %c0_i32_0 = arith.constant 0 : i32
    return %arg0, %c0_i32 : i32, i32
  }
  func.func @transform_6(%arg0: i32, %arg1: i32) -> (i32, i32) {
    %c0_i32 = arith.constant 0 : i32
    %c0_i32_0 = arith.constant 0 : i32
    return %arg0, %c0_i32 : i32, i32
  }
}

</mosaic_0001>

<llo_original>
// kernel: recurrent_block_forward.1
$region0: #{recurrent_block_forward.1}
  #allocation0 [shape = 'u32[]', space=smem, size = 0x4, offset = 0x4, fixed_abs, tag = 'smem constant byte address 0x4 - core index']
  #allocation1 [shape = 'u32[144,128]{1,0:T(1,128)}', space=vmem, size = 0x12000, scoped, tag = 'internal scratch']
  #allocation2 [shape = 'f32[8,128]{1,0:T(8,128)}', space=vmem, size = 0x1000, scoped, tag = 'scratch operand']
  #allocation3 [shape = 'f32[8,128]{1,0:T(8,128)}', space=vmem, size = 0x1000, scoped, tag = 'scratch operand']
  %s0 = inlined_call_operand.vmem [shape: bf16[8,8,512], index: 0, kind: input, shape index: {}]
  %s1 = inlined_call_operand.vmem [shape: bf16[128,512], index: 1, kind: input, shape index: {}]
  %s2 = inlined_call_operand.vmem [shape: f32[8,128], index: 2, kind: input, shape index: {}]
  %s3 = inlined_call_operand.vmem [shape: f32[8,128], index: 3, kind: input, shape index: {}]
  %s4 = inlined_call_operand.vmem [shape: bf16[8,8,128], index: 4, kind: output, shape index: {0}]
  %s5 = inlined_call_operand.vmem [shape: f32[8,128], index: 5, kind: output, shape index: {1}]
  %s6 = inlined_call_operand.vmem [shape: f32[8,128], index: 6, kind: output, shape index: {2}]
  %7 = xla_tuple %s4, %s5, %s6
  %s8 = sld [smem:[#allocation0]]
  $region46: #{recurrent_block_forward.1} parent=0
    _
  %s10 = ssub.s32 1, %s8
  %s11 = scalar_select 0, %s10, %s8
  // Predicated region
  $region2: #{recurrent_block_forward.1} parent=0 // pred_check
    _
  $region3: #{recurrent_block_forward.1} parent=0 // pred_check_branch
    %13 = sbr.rel (0) target = $region5
  $region4: #{recurrent_block_forward.1} parent=0 // pred_region
    _
  $region5: #{recurrent_block_forward.1} parent=0 // pred_fallthru
    _
  // Predicated region
  $region6: #{recurrent_block_forward.1} parent=0 // pred_check
    _
  $region7: #{recurrent_block_forward.1} parent=0 // pred_check_branch
    %15 = sbr.rel (0) target = $region9
  $region8: #{recurrent_block_forward.1} parent=0 // pred_region
    _
  $region9: #{recurrent_block_forward.1} parent=0 // pred_fallthru
    _
  // Predicated region
  $region10: #{recurrent_block_forward.1} parent=0 // pred_check
    _
  $region11: #{recurrent_block_forward.1} parent=0 // pred_check_branch
    %17 = sbr.rel (0) target = $region13
  $region12: #{recurrent_block_forward.1} parent=0 // pred_region
    _
  $region13: #{recurrent_block_forward.1} parent=0 // pred_fallthru
    _
  // Predicated region
  $region14: #{recurrent_block_forward.1} parent=0 // pred_check
    _
  $region15: #{recurrent_block_forward.1} parent=0 // pred_check_branch
    %19 = sbr.rel (0) target = $region17
  $region16: #{recurrent_block_forward.1} parent=0 // pred_region
    _
  $region17: #{recurrent_block_forward.1} parent=0 // pred_fallthru
    _
  %p21 = scmp.eq.s32.totalorder 0, 0
  // Predicated region
  $region18: #{recurrent_block_forward.1} parent=0 // pred_check
    %p22 = pneg %p21
  $region19: #{recurrent_block_forward.1} parent=0 // pred_check_branch
    %24 = sbr.rel (%p22) target = $region21
  $region20: #{recurrent_block_forward.1} parent=0 // pred_region
    %v25 = vld [vmem:[%s2] sm:$0xff]
    %26 = vst [vmem:[#allocation2] sm:$0xff] %v25
    %v27 = vld [vmem:[%s3] sm:$0xff]
    %28 = vst [vmem:[#allocation3] sm:$0xff] %v27
  $region21: #{recurrent_block_forward.1} parent=0 // pred_fallthru
    _
  %v29 = vld [vmem:[%s1] sm:$0xff]
  %v30 = vld [vmem:[%s1 + $0x8] sm:$0xff]
  %v31 = vld [vmem:[%s1 + $0x10] sm:$0xff]
  %v32 = vld [vmem:[%s1 + $0x18] sm:$0xff]
  %v33 = vld [vmem:[%s1 + $0x20] sm:$0xff]
  %v34 = vld [vmem:[%s1 + $0x28] sm:$0xff]
  %v35 = vld [vmem:[%s1 + $0x30] sm:$0xff]
  %v36 = vld [vmem:[%s1 + $0x38] sm:$0xff]
  %v37 = vld [vmem:[%s1 + $0x40] sm:$0xff]
  %v38 = vld [vmem:[%s1 + $0x48] sm:$0xff]
  %v39 = vld [vmem:[%s1 + $0x50] sm:$0xff]
  %v40 = vld [vmem:[%s1 + $0x58] sm:$0xff]
  %v41 = vld [vmem:[%s1 + $0x60] sm:$0xff]
  %v42 = vld [vmem:[%s1 + $0x68] sm:$0xff]
  %v43 = vld [vmem:[%s1 + $0x70] sm:$0xff]
  %v44 = vld [vmem:[%s1 + $0x78] sm:$0xff]
  %v45 = vld [vmem:[%s1 + $0x80] sm:$0xff]
  %v46 = vld [vmem:[%s1 + $0x88] sm:$0xff]
  %v47 = vld [vmem:[%s1 + $0x90] sm:$0xff]
  %v48 = vld [vmem:[%s1 + $0x98] sm:$0xff]
  %v49 = vld [vmem:[%s1 + $0xa0] sm:$0xff]
  %v50 = vld [vmem:[%s1 + $0xa8] sm:$0xff]
  %v51 = vld [vmem:[%s1 + $0xb0] sm:$0xff]
  %v52 = vld [vmem:[%s1 + $0xb8] sm:$0xff]
  %v53 = vld [vmem:[%s1 + $0xc0] sm:$0xff]
  %v54 = vld [vmem:[%s1 + $0xc8] sm:$0xff]
  %v55 = vld [vmem:[%s1 + $0xd0] sm:$0xff]
  %v56 = vld [vmem:[%s1 + $0xd8] sm:$0xff]
  %v57 = vld [vmem:[%s1 + $0xe0] sm:$0xff]
  %v58 = vld [vmem:[%s1 + $0xe8] sm:$0xff]
  %v59 = vld [vmem:[%s1 + $0xf0] sm:$0xff]
  %v60 = vld [vmem:[%s1 + $0xf8] sm:$0xff]
  %v61 = vld [vmem:[#allocation2] sm:$0xff]
  %v62 = vld [vmem:[#allocation3] sm:$0xff]
  %v63 = vld [vmem:[%s0] sm:$0xff]
  %v64 = vld [vmem:[%s0 + $0x8] sm:$0xff]
  %v65 = vunpack.c.l.bf16 %v63
  %v66 = vunpack.c.h.bf16 %v63
  %v67 = vunpack.c.l.bf16 %v64
  %v68 = vunpack.c.h.bf16 %v64
  %v69 = vpack.c.bf16 %v61, %v61
  %v102 = vunpack.c.l.b16 %v29
  %v103 = vunpack.c.h.b16 %v29
  %v104 = vunpack.c.l.b16 %v30
  %v105 = vunpack.c.h.b16 %v30
  %v106 = vunpack.c.l.b16 %v31
  %v107 = vunpack.c.h.b16 %v31
  %v108 = vunpack.c.l.b16 %v32
  %v109 = vunpack.c.h.b16 %v32
  %v110 = vunpack.c.l.b16 %v33
  %v111 = vunpack.c.h.b16 %v33
  %v112 = vunpack.c.l.b16 %v34
  %v113 = vunpack.c.h.b16 %v34
  %v114 = vunpack.c.l.b16 %v35
  %v115 = vunpack.c.h.b16 %v35
  %v116 = vunpack.c.l.b16 %v36
  %v117 = vunpack.c.h.b16 %v36
  %v118 = vunpack.c.l.b16 %v37
  %v119 = vunpack.c.h.b16 %v37
  %v120 = vunpack.c.l.b16 %v38
  %v121 = vunpack.c.h.b16 %v38
  %v122 = vunpack.c.l.b16 %v39
  %v123 = vunpack.c.h.b16 %v39
  %v124 = vunpack.c.l.b16 %v40
  %v125 = vunpack.c.h.b16 %v40
  %v126 = vunpack.c.l.b16 %v41
  %v127 = vunpack.c.h.b16 %v41
  %v128 = vunpack.c.l.b16 %v42
  %v129 = vunpack.c.h.b16 %v42
  %v130 = vunpack.c.l.b16 %v43
  %v131 = vunpack.c.h.b16 %v43
  %v132 = vunpack.c.l.b16 %v44
  %v133 = vunpack.c.h.b16 %v44
  %v134 = vunpack.c.l.b16 %v45
  %v135 = vunpack.c.h.b16 %v45
  %v136 = vunpack.c.l.b16 %v46
  %v137 = vunpack.c.h.b16 %v46
  %v138 = vunpack.c.l.b16 %v47
  %v139 = vunpack.c.h.b16 %v47
  %v140 = vunpack.c.l.b16 %v48
  %v141 = vunpack.c.h.b16 %v48
  %v142 = vunpack.c.l.b16 %v49
  %v143 = vunpack.c.h.b16 %v49
  %v144 = vunpack.c.l.b16 %v50
  %v145 = vunpack.c.h.b16 %v50
  %v146 = vunpack.c.l.b16 %v51
  %v147 = vunpack.c.h.b16 %v51
  %v148 = vunpack.c.l.b16 %v52
  %v149 = vunpack.c.h.b16 %v52
  %v150 = vunpack.c.l.b16 %v53
  %v151 = vunpack.c.h.b16 %v53
  %v152 = vunpack.c.l.b16 %v54
  %v153 = vunpack.c.h.b16 %v54
  %v154 = vunpack.c.l.b16 %v55
  %v155 = vunpack.c.h.b16 %v55
  %v156 = vunpack.c.l.b16 %v56
  %v157 = vunpack.c.h.b16 %v56
  %v158 = vunpack.c.l.b16 %v57
  %v159 = vunpack.c.h.b16 %v57
  %v160 = vunpack.c.l.b16 %v58
  %v161 = vunpack.c.h.b16 %v58
  %v162 = vunpack.c.l.b16 %v59
  %v163 = vunpack.c.h.b16 %v59
  %v164 = vunpack.c.l.b16 %v60
  %v165 = vunpack.c.h.b16 %v60
  %v166 = vpack.c.b16 %v106, %v102
  %v167 = vpack.c.b16 %v107, %v103
  %v168 = vpack.c.b16 %v108, %v104
  %v169 = vpack.c.b16 %v109, %v105
  %v170 = vpack.c.b16 %v114, %v110
  %v171 = vpack.c.b16 %v115, %v111
  %v172 = vpack.c.b16 %v116, %v112
  %v173 = vpack.c.b16 %v117, %v113
  %v174 = vpack.c.b16 %v122, %v118
  %v175 = vpack.c.b16 %v123, %v119
  %v176 = vpack.c.b16 %v124, %v120
  %v177 = vpack.c.b16 %v125, %v121
  %v178 = vpack.c.b16 %v130, %v126
  %v179 = vpack.c.b16 %v131, %v127
  %v180 = vpack.c.b16 %v132, %v128
  %v181 = vpack.c.b16 %v133, %v129
  %v182 = vpack.c.b16 %v138, %v134
  %v183 = vpack.c.b16 %v139, %v135
  %v184 = vpack.c.b16 %v140, %v136
  %v185 = vpack.c.b16 %v141, %v137
  %v186 = vpack.c.b16 %v146, %v142
  %v187 = vpack.c.b16 %v147, %v143
  %v188 = vpack.c.b16 %v148, %v144
  %v189 = vpack.c.b16 %v149, %v145
  %v190 = vpack.c.b16 %v154, %v150
  %v191 = vpack.c.b16 %v155, %v151
  %v192 = vpack.c.b16 %v156, %v152
  %v193 = vpack.c.b16 %v157, %v153
  %v194 = vpack.c.b16 %v162, %v158
  %v195 = vpack.c.b16 %v163, %v159
  %v196 = vpack.c.b16 %v164, %v160
  %v197 = vpack.c.b16 %v165, %v161
  %230 = vmatprep.subr.bf16.mxu0 %v167
  %231 = vmatpush1.bf16.msra.mxu0 %v166
  %232 = vmatprep.subr.bf16.mxu0 %v171
  %233 = vmatpush1.bf16.msra.mxu0 %v170
  %234 = vmatprep.subr.bf16.mxu0 %v175
  %235 = vmatpush1.bf16.msra.mxu0 %v174
  %236 = vmatprep.subr.bf16.mxu0 %v179
  %237 = vmatpush1.bf16.msra.mxu0 %v178
  %238 = vmatprep.subr.bf16.mxu0 %v183
  %239 = vmatpush1.bf16.msra.mxu0 %v182
  %240 = vmatprep.subr.bf16.mxu0 %v187
  %241 = vmatpush1.bf16.msra.mxu0 %v186
  %242 = vmatprep.subr.bf16.mxu0 %v191
  %243 = vmatpush1.bf16.msra.mxu0 %v190
  %244 = vmatprep.subr.bf16.mxu0 %v195
  %245 = vmatpush1.bf16.msra.mxu0 %v194
  %246 = vmatprep.subr.bf16.mxu0 0
  %247 = vmatpush1.bf16.msra.mxu0 0
  %248 = vmatprep.subr.bf16.mxu0 0
  %249 = vmatpush1.bf16.msra.mxu0 0
  %250 = vmatprep.subr.bf16.mxu0 0
  %251 = vmatpush1.bf16.msra.mxu0 0
  %252 = vmatprep.subr.bf16.mxu0 0
  %253 = vmatpush1.bf16.msra.mxu0 0
  %254 = vmatprep.subr.bf16.mxu0 0
  %255 = vmatpush1.bf16.msra.mxu0 0
  %256 = vmatprep.subr.bf16.mxu0 0
  %257 = vmatpush1.bf16.msra.mxu0 0
  %258 = vmatprep.subr.bf16.mxu0 0
  %259 = vmatpush1.bf16.msra.mxu0 0
  %260 = vmatprep.subr.bf16.mxu0 0
  %261 = vmatpush1.bf16.msra.mxu0 0
  %262 = vmatprep.mubr.bf16.mxu0 0
  %263 = vmatmul.mubr.bf16.gmra.mrb[0].mxu0 %v69
  %v264 = vpop.f32.mrb[0].mxu0
  %v265 = vadd.f32 0.0, %v264
  %v266 = vpop.f32.mrb[0].mxu0
  %v267 = vadd.f32 0.0, %v266
  %v268 = vpop.f32.mrb[0].mxu0
  %v269 = vpop.f32.mrb[0].mxu0
  %270 = vdwg.mxu0
  %271 = vmatprep.subr.bf16.mxu0 %v169
  %272 = vmatpush1.bf16.msra.mxu0 %v168
  %273 = vmatprep.subr.bf16.mxu0 %v173
  %274 = vmatpush1.bf16.msra.mxu0 %v172
  %275 = vmatprep.subr.bf16.mxu0 %v177
  %276 = vmatpush1.bf16.msra.mxu0 %v176
  %277 = vmatprep.subr.bf16.mxu0 %v181
  %278 = vmatpush1.bf16.msra.mxu0 %v180
  %279 = vmatprep.subr.bf16.mxu0 %v185
  %280 = vmatpush1.bf16.msra.mxu0 %v184
  %281 = vmatprep.subr.bf16.mxu0 %v189
  %282 = vmatpush1.bf16.msra.mxu0 %v188
  %283 = vmatprep.subr.bf16.mxu0 %v193
  %284 = vmatpush1.bf16.msra.mxu0 %v192
  %285 = vmatprep.subr.bf16.mxu0 %v197
  %286 = vmatpush1.bf16.msra.mxu0 %v196
  %287 = vmatprep.subr.bf16.mxu0 0
  %288 = vmatpush1.bf16.msra.mxu0 0
  %289 = vmatprep.subr.bf16.mxu0 0
  %290 = vmatpush1.bf16.msra.mxu0 0
  %291 = vmatprep.subr.bf16.mxu0 0
  %292 = vmatpush1.bf16.msra.mxu0 0
  %293 = vmatprep.subr.bf16.mxu0 0
  %294 = vmatpush1.bf16.msra.mxu0 0
  %295 = vmatprep.subr.bf16.mxu0 0
  %296 = vmatpush1.bf16.msra.mxu0 0
  %297 = vmatprep.subr.bf16.mxu0 0
  %298 = vmatpush1.bf16.msra.mxu0 0
  %299 = vmatprep.subr.bf16.mxu0 0
  %300 = vmatpush1.bf16.msra.mxu0 0
  %301 = vmatprep.subr.bf16.mxu0 0
  %302 = vmatpush1.bf16.msra.mxu0 0
  %303 = vmatprep.mubr.bf16.mxu0 0
  %304 = vmatmul.mubr.bf16.gmra.mrb[0].mxu0 %v69
  %v305 = vpop.f32.mrb[0].mxu0
  %v306 = vadd.f32 0.0, %v305
  %v307 = vpop.f32.mrb[0].mxu0
  %v308 = vadd.f32 0.0, %v307
  %v309 = vpop.f32.mrb[0].mxu0
  %v310 = vpop.f32.mrb[0].mxu0
  %311 = vdwg.mxu0
  %v312 = vadd.f32 %v65, %v265
  %v313 = vadd.f32 %v66, %v267
  %v314 = vadd.f32 %v67, %v306
  %v315 = vadd.f32 %v68, %v308
  %v316 = vmul.f32 %v312, 0.5
  %v317 = vmul.f32 %v313, 0.5
  %v318 = vmul.f32 %v314, 0.5
  %v319 = vtanh.pop %v316
  %v320 = vtanh.pop %v317
  %v321 = vtanh.pop %v318
  %v322 = vmul.f32 %v319, 0.5
  %v323 = vmul.f32 %v320, 0.5
  %v324 = vmul.f32 %v321, 0.5
  %v325 = vadd.f32 %v322, 0.5
  %v326 = vadd.f32 %v323, 0.5
  %v327 = vadd.f32 %v324, 0.5
  %v328 = vtanh.pop %v315
  %v329 = vmul.f32 %v326, %v62
  %v330 = vmul.f32 %v325, %v328
  %v331 = vadd.f32 %v329, %v330
  %v332 = vtanh.pop %v331
  %v333 = vmul.f32 %v327, %v332
  %v334 = vpack.c.bf16 %v333, %v333
  %335 = vst [vmem:[%s4] sm:$0xf] %v334
  %s336 = scalar_lea.vmem %s0, 16
  %v337 = vld [vmem:[%s336] sm:$0xff]
  %v338 = vld [vmem:[%s336 + $0x8] sm:$0xff]
  %v339 = vunpack.c.l.bf16 %v337
  %v340 = vunpack.c.h.bf16 %v337
  %v341 = vunpack.c.l.bf16 %v338
  %v342 = vunpack.c.h.bf16 %v338
  %343 = vmatprep.subr.bf16.mxu0 %v167
  %344 = vmatpush1.bf16.msra.mxu0 %v166
  %345 = vmatprep.subr.bf16.mxu0 %v171
  %346 = vmatpush1.bf16.msra.mxu0 %v170
  %347 = vmatprep.subr.bf16.mxu0 %v175
  %348 = vmatpush1.bf16.msra.mxu0 %v174
  %349 = vmatprep.subr.bf16.mxu0 %v179
  %350 = vmatpush1.bf16.msra.mxu0 %v178
  %351 = vmatprep.subr.bf16.mxu0 %v183
  %352 = vmatpush1.bf16.msra.mxu0 %v182
  %353 = vmatprep.subr.bf16.mxu0 %v187
  %354 = vmatpush1.bf16.msra.mxu0 %v186
  %355 = vmatprep.subr.bf16.mxu0 %v191
  %356 = vmatpush1.bf16.msra.mxu0 %v190
  %357 = vmatprep.subr.bf16.mxu0 %v195
  %358 = vmatpush1.bf16.msra.mxu0 %v194
  %359 = vmatprep.subr.bf16.mxu0 0
  %360 = vmatpush1.bf16.msra.mxu0 0
  %361 = vmatprep.subr.bf16.mxu0 0
  %362 = vmatpush1.bf16.msra.mxu0 0
  %363 = vmatprep.subr.bf16.mxu0 0
  %364 = vmatpush1.bf16.msra.mxu0 0
  %365 = vmatprep.subr.bf16.mxu0 0
  %366 = vmatpush1.bf16.msra.mxu0 0
  %367 = vmatprep.subr.bf16.mxu0 0
  %368 = vmatpush1.bf16.msra.mxu0 0
  %369 = vmatprep.subr.bf16.mxu0 0
  %370 = vmatpush1.bf16.msra.mxu0 0
  %371 = vmatprep.subr.bf16.mxu0 0
  %372 = vmatpush1.bf16.msra.mxu0 0
  %373 = vmatprep.subr.bf16.mxu0 0
  %374 = vmatpush1.bf16.msra.mxu0 0
  %375 = vmatprep.mubr.bf16.mxu0 0
  %376 = vmatmul.mubr.bf16.gmra.mrb[0].mxu0 %v334
  %v377 = vpop.f32.mrb[0].mxu0
  %v378 = vadd.f32 0.0, %v377
  %v379 = vpop.f32.mrb[0].mxu0
  %v380 = vadd.f32 0.0, %v379
  %v381 = vpop.f32.mrb[0].mxu0
  %v382 = vpop.f32.mrb[0].mxu0
  %383 = vdwg.mxu0
  %384 = vmatprep.subr.bf16.mxu0 %v169
  %385 = vmatpush1.bf16.msra.mxu0 %v168
  %386 = vmatprep.subr.bf16.mxu0 %v173
  %387 = vmatpush1.bf16.msra.mxu0 %v172
  %388 = vmatprep.subr.bf16.mxu0 %v177
  %389 = vmatpush1.bf16.msra.mxu0 %v176
  %390 = vmatprep.subr.bf16.mxu0 %v181
  %391 = vmatpush1.bf16.msra.mxu0 %v180
  %392 = vmatprep.subr.bf16.mxu0 %v185
  %393 = vmatpush1.bf16.msra.mxu0 %v184
  %394 = vmatprep.subr.bf16.mxu0 %v189
  %395 = vmatpush1.bf16.msra.mxu0 %v188
  %396 = vmatprep.subr.bf16.mxu0 %v193
  %397 = vmatpush1.bf16.msra.mxu0 %v192
  %398 = vmatprep.subr.bf16.mxu0 %v197
  %399 = vmatpush1.bf16.msra.mxu0 %v196
  %400 = vmatprep.subr.bf16.mxu0 0
  %401 = vmatpush1.bf16.msra.mxu0 0
  %402 = vmatprep.subr.bf16.mxu0 0
  %403 = vmatpush1.bf16.msra.mxu0 0
  %404 = vmatprep.subr.bf16.mxu0 0
  %405 = vmatpush1.bf16.msra.mxu0 0
  %406 = vmatprep.subr.bf16.mxu0 0
  %407 = vmatpush1.bf16.msra.mxu0 0
  %408 = vmatprep.subr.bf16.mxu0 0
  %409 = vmatpush1.bf16.msra.mxu0 0
  %410 = vmatprep.subr.bf16.mxu0 0
  %411 = vmatpush1.bf16.msra.mxu0 0
  %412 = vmatprep.subr.bf16.mxu0 0
  %413 = vmatpush1.bf16.msra.mxu0 0
  %414 = vmatprep.subr.bf16.mxu0 0
  %415 = vmatpush1.bf16.msra.mxu0 0
  %416 = vmatprep.mubr.bf16.mxu0 0
  %417 = vmatmul.mubr.bf16.gmra.mrb[0].mxu0 %v334
  %v418 = vpop.f32.mrb[0].mxu0
  %v419 = vadd.f32 0.0, %v418
  %v420 = vpop.f32.mrb[0].mxu0
  %v421 = vadd.f32 0.0, %v420
  %v422 = vpop.f32.mrb[0].mxu0
  %v423 = vpop.f32.mrb[0].mxu0
  %424 = vdwg.mxu0
  %v425 = vadd.f32 %v339, %v378
  %v426 = vadd.f32 %v340, %v380
  %v427 = vadd.f32 %v341, %v419
  %v428 = vadd.f32 %v342, %v421
  %v429 = vmul.f32 %v425, 0.5
  %v430 = vmul.f32 %v426, 0.5
  %v431 = vmul.f32 %v427, 0.5
  %v432 = vtanh.pop %v429
  %v433 = vtanh.pop %v430
  %v434 = vtanh.pop %v431
  %v435 = vmul.f32 %v432, 0.5
  %v436 = vmul.f32 %v433, 0.5
  %v437 = vmul.f32 %v434, 0.5
  %v438 = vadd.f32 %v435, 0.5
  %v439 = vadd.f32 %v436, 0.5
  %v440 = vadd.f32 %v437, 0.5
  %v441 = vtanh.pop %v428
  %v442 = vmul.f32 %v439, %v331
  %v443 = vmul.f32 %v438, %v441
  %v444 = vadd.f32 %v442, %v443
  %v445 = vtanh.pop %v444
  %v446 = vmul.f32 %v440, %v445
  %v447 = vpack.c.bf16 %v446, %v446
  %s448 = scalar_lea.vmem %s4, 4
  %449 = vst [vmem:[%s448] sm:$0xf] %v447
  %s450 = scalar_lea.vmem %s0, 32
  %v451 = vld [vmem:[%s450] sm:$0xff]
  %v452 = vld [vmem:[%s450 + $0x8] sm:$0xff]
  %v453 = vunpack.c.l.bf16 %v451
  %v454 = vunpack.c.h.bf16 %v451
  %v455 = vunpack.c.l.bf16 %v452
  %v456 = vunpack.c.h.bf16 %v452
  %457 = vmatprep.subr.bf16.mxu0 %v167
  %458 = vmatpush1.bf16.msra.mxu0 %v166
  %459 = vmatprep.subr.bf16.mxu0 %v171
  %460 = vmatpush1.bf16.msra.mxu0 %v170
  %461 = vmatprep.subr.bf16.mxu0 %v175
  %462 = vmatpush1.bf16.msra.mxu0 %v174
  %463 = vmatprep.subr.bf16.mxu0 %v179
  %464 = vmatpush1.bf16.msra.mxu0 %v178
  %465 = vmatprep.subr.bf16.mxu0 %v183
  %466 = vmatpush1.bf16.msra.mxu0 %v182
  %467 = vmatprep.subr.bf16.mxu0 %v187
  %468 = vmatpush1.bf16.msra.mxu0 %v186
  %469 = vmatprep.subr.bf16.mxu0 %v191
  %470 = vmatpush1.bf16.msra.mxu0 %v190
  %471 = vmatprep.subr.bf16.mxu0 %v195
  %472 = vmatpush1.bf16.msra.mxu0 %v194
  %473 = vmatprep.subr.bf16.mxu0 0
  %474 = vmatpush1.bf16.msra.mxu0 0
  %475 = vmatprep.subr.bf16.mxu0 0
  %476 = vmatpush1.bf16.msra.mxu0 0
  %477 = vmatprep.subr.bf16.mxu0 0
  %478 = vmatpush1.bf16.msra.mxu0 0
  %479 = vmatprep.subr.bf16.mxu0 0
  %480 = vmatpush1.bf16.msra.mxu0 0
  %481 = vmatprep.subr.bf16.mxu0 0
  %482 = vmatpush1.bf16.msra.mxu0 0
  %483 = vmatprep.subr.bf16.mxu0 0
  %484 = vmatpush1.bf16.msra.mxu0 0
  %485 = vmatprep.subr.bf16.mxu0 0
  %486 = vmatpush1.bf16.msra.mxu0 0
  %487 = vmatprep.subr.bf16.mxu0 0
  %488 = vmatpush1.bf16.msra.mxu0 0
  %489 = vmatprep.mubr.bf16.mxu0 0
  %490 = vmatmul.mubr.bf16.gmra.mrb[0].mxu0 %v447
  %v491 = vpop.f32.mrb[0].mxu0
  %v492 = vadd.f32 0.0, %v491
  %v493 = vpop.f32.mrb[0].mxu0
  %v494 = vadd.f32 0.0, %v493
  %v495 = vpop.f32.mrb[0].mxu0
  %v496 = vpop.f32.mrb[0].mxu0
  %497 = vdwg.mxu0
  %498 = vmatprep.subr.bf16.mxu0 %v169
  %499 = vmatpush1.bf16.msra.mxu0 %v168
  %500 = vmatprep.subr.bf16.mxu0 %v173
  %501 = vmatpush1.bf16.msra.mxu0 %v172
  %502 = vmatprep.subr.bf16.mxu0 %v177
  %503 = vmatpush1.bf16.msra.mxu0 %v176
  %504 = vmatprep.subr.bf16.mxu0 %v181
  %505 = vmatpush1.bf16.msra.mxu0 %v180
  %506 = vmatprep.subr.bf16.mxu0 %v185
  %507 = vmatpush1.bf16.msra.mxu0 %v184
  %508 = vmatprep.subr.bf16.mxu0 %v189
  %509 = vmatpush1.bf16.msra.mxu0 %v188
  %510 = vmatprep.subr.bf16.mxu0 %v193
  %511 = vmatpush1.bf16.msra.mxu0 %v192
  %512 = vmatprep.subr.bf16.mxu0 %v197
  %513 = vmatpush1.bf16.msra.mxu0 %v196
  %514 = vmatprep.subr.bf16.mxu0 0
  %515 = vmatpush1.bf16.msra.mxu0 0
  %516 = vmatprep.subr.bf16.mxu0 0
  %517 = vmatpush1.bf16.msra.mxu0 0
  %518 = vmatprep.subr.bf16.mxu0 0
  %519 = vmatpush1.bf16.msra.mxu0 0
  %520 = vmatprep.subr.bf16.mxu0 0
  %521 = vmatpush1.bf16.msra.mxu0 0
  %522 = vmatprep.subr.bf16.mxu0 0
  %523 = vmatpush1.bf16.msra.mxu0 0
  %524 = vmatprep.subr.bf16.mxu0 0
  %525 = vmatpush1.bf16.msra.mxu0 0
  %526 = vmatprep.subr.bf16.mxu0 0
  %527 = vmatpush1.bf16.msra.mxu0 0
  %528 = vmatprep.subr.bf16.mxu0 0
  %529 = vmatpush1.bf16.msra.mxu0 0
  %530 = vmatprep.mubr.bf16.mxu0 0
  %531 = vmatmul.mubr.bf16.gmra.mrb[0].mxu0 %v447
  %v532 = vpop.f32.mrb[0].mxu0
  %v533 = vadd.f32 0.0, %v532
  %v534 = vpop.f32.mrb[0].mxu0
  %v535 = vadd.f32 0.0, %v534
  %v536 = vpop.f32.mrb[0].mxu0
  %v537 = vpop.f32.mrb[0].mxu0
  %538 = vdwg.mxu0
  %v539 = vadd.f32 %v453, %v492
  %v540 = vadd.f32 %v454, %v494
  %v541 = vadd.f32 %v455, %v533
  %v542 = vadd.f32 %v456, %v535
  %v543 = vmul.f32 %v539, 0.5
  %v544 = vmul.f32 %v540, 0.5
  %v545 = vmul.f32 %v541, 0.5
  %v546 = vtanh.pop %v543
  %v547 = vtanh.pop %v544
  %v548 = vtanh.pop %v545
  %v549 = vmul.f32 %v546, 0.5
  %v550 = vmul.f32 %v547, 0.5
  %v551 = vmul.f32 %v548, 0.5
  %v552 = vadd.f32 %v549, 0.5
  %v553 = vadd.f32 %v550, 0.5
  %v554 = vadd.f32 %v551, 0.5
  %v555 = vtanh.pop %v542
  %v556 = vmul.f32 %v553, %v444
  %v557 = vmul.f32 %v552, %v555
  %v558 = vadd.f32 %v556, %v557
  %v559 = vtanh.pop %v558
  %v560 = vmul.f32 %v554, %v559
  %v561 = vpack.c.bf16 %v560, %v560
  %s562 = scalar_lea.vmem %s4, 8
  %563 = vst [vmem:[%s562] sm:$0xf] %v561
  %s564 = scalar_lea.vmem %s0, 48
  %v565 = vld [vmem:[%s564] sm:$0xff]
  %v566 = vld [vmem:[%s564 + $0x8] sm:$0xff]
  %v567 = vunpack.c.l.bf16 %v565
  %v568 = vunpack.c.h.bf16 %v565
  %v569 = vunpack.c.l.bf16 %v566
  %v570 = vunpack.c.h.bf16 %v566
  %571 = vmatprep.subr.bf16.mxu0 %v167
  %572 = vmatpush1.bf16.msra.mxu0 %v166
  %573 = vmatprep.subr.bf16.mxu0 %v171
  %574 = vmatpush1.bf16.msra.mxu0 %v170
  %575 = vmatprep.subr.bf16.mxu0 %v175
  %576 = vmatpush1.bf16.msra.mxu0 %v174
  %577 = vmatprep.subr.bf16.mxu0 %v179
  %578 = vmatpush1.bf16.msra.mxu0 %v178
  %579 = vmatprep.subr.bf16.mxu0 %v183
  %580 = vmatpush1.bf16.msra.mxu0 %v182
  %581 = vmatprep.subr.bf16.mxu0 %v187
  %582 = vmatpush1.bf16.msra.mxu0 %v186
  %583 = vmatprep.subr.bf16.mxu0 %v191
  %584 = vmatpush1.bf16.msra.mxu0 %v190
  %585 = vmatprep.subr.bf16.mxu0 %v195
  %586 = vmatpush1.bf16.msra.mxu0 %v194
  %587 = vmatprep.subr.bf16.mxu0 0
  %588 = vmatpush1.bf16.msra.mxu0 0
  %589 = vmatprep.subr.bf16.mxu0 0
  %590 = vmatpush1.bf16.msra.mxu0 0
  %591 = vmatprep.subr.bf16.mxu0 0
  %592 = vmatpush1.bf16.msra.mxu0 0
  %593 = vmatprep.subr.bf16.mxu0 0
  %594 = vmatpush1.bf16.msra.mxu0 0
  %595 = vmatprep.subr.bf16.mxu0 0
  %596 = vmatpush1.bf16.msra.mxu0 0
  %597 = vmatprep.subr.bf16.mxu0 0
  %598 = vmatpush1.bf16.msra.mxu0 0
  %599 = vmatprep.subr.bf16.mxu0 0
  %600 = vmatpush1.bf16.msra.mxu0 0
  %601 = vmatprep.subr.bf16.mxu0 0
  %602 = vmatpush1.bf16.msra.mxu0 0
  %603 = vmatprep.mubr.bf16.mxu0 0
  %604 = vmatmul.mubr.bf16.gmra.mrb[0].mxu0 %v561
  %v605 = vpop.f32.mrb[0].mxu0
  %v606 = vadd.f32 0.0, %v605
  %v607 = vpop.f32.mrb[0].mxu0
  %v608 = vadd.f32 0.0, %v607
  %v609 = vpop.f32.mrb[0].mxu0
  %v610 = vpop.f32.mrb[0].mxu0
  %611 = vdwg.mxu0
  %612 = vmatprep.subr.bf16.mxu0 %v169
  %613 = vmatpush1.bf16.msra.mxu0 %v168
  %614 = vmatprep.subr.bf16.mxu0 %v173
  %615 = vmatpush1.bf16.msra.mxu0 %v172
  %616 = vmatprep.subr.bf16.mxu0 %v177
  %617 = vmatpush1.bf16.msra.mxu0 %v176
  %618 = vmatprep.subr.bf16.mxu0 %v181
  %619 = vmatpush1.bf16.msra.mxu0 %v180
  %620 = vmatprep.subr.bf16.mxu0 %v185
  %621 = vmatpush1.bf16.msra.mxu0 %v184
  %622 = vmatprep.subr.bf16.mxu0 %v189
  %623 = vmatpush1.bf16.msra.mxu0 %v188
  %624 = vmatprep.subr.bf16.mxu0 %v193
  %625 = vmatpush1.bf16.msra.mxu0 %v192
  %626 = vmatprep.subr.bf16.mxu0 %v197
  %627 = vmatpush1.bf16.msra.mxu0 %v196
  %628 = vmatprep.subr.bf16.mxu0 0
  %629 = vmatpush1.bf16.msra.mxu0 0
  %630 = vmatprep.subr.bf16.mxu0 0
  %631 = vmatpush1.bf16.msra.mxu0 0
  %632 = vmatprep.subr.bf16.mxu0 0
  %633 = vmatpush1.bf16.msra.mxu0 0
  %634 = vmatprep.subr.bf16.mxu0 0
  %635 = vmatpush1.bf16.msra.mxu0 0
  %636 = vmatprep.subr.bf16.mxu0 0
  %637 = vmatpush1.bf16.msra.mxu0 0
  %638 = vmatprep.subr.bf16.mxu0 0
  %639 = vmatpush1.bf16.msra.mxu0 0
  %640 = vmatprep.subr.bf16.mxu0 0
  %641 = vmatpush1.bf16.msra.mxu0 0
  %642 = vmatprep.subr.bf16.mxu0 0
  %643 = vmatpush1.bf16.msra.mxu0 0
  %644 = vmatprep.mubr.bf16.mxu0 0
  %645 = vmatmul.mubr.bf16.gmra.mrb[0].mxu0 %v561
  %v646 = vpop.f32.mrb[0].mxu0
  %v647 = vadd.f32 0.0, %v646
  %v648 = vpop.f32.mrb[0].mxu0
  %v649 = vadd.f32 0.0, %v648
  %v650 = vpop.f32.mrb[0].mxu0
  %v651 = vpop.f32.mrb[0].mxu0
  %652 = vdwg.mxu0
  %v653 = vadd.f32 %v567, %v606
  %v654 = vadd.f32 %v568, %v608
  %v655 = vadd.f32 %v569, %v647
  %v656 = vadd.f32 %v570, %v649
  %v657 = vmul.f32 %v653, 0.5
  %v658 = vmul.f32 %v654, 0.5
  %v659 = vmul.f32 %v655, 0.5
  %v660 = vtanh.pop %v657
  %v661 = vtanh.pop %v658
  %v662 = vtanh.pop %v659
  %v663 = vmul.f32 %v660, 0.5
  %v664 = vmul.f32 %v661, 0.5
  %v665 = vmul.f32 %v662, 0.5
  %v666 = vadd.f32 %v663, 0.5
  %v667 = vadd.f32 %v664, 0.5
  %v668 = vadd.f32 %v665, 0.5
  %v669 = vtanh.pop %v656
  %v670 = vmul.f32 %v667, %v558
  %v671 = vmul.f32 %v666, %v669
  %v672 = vadd.f32 %v670, %v671
  %v673 = vtanh.pop %v672
  %v674 = vmul.f32 %v668, %v673
  %v675 = vpack.c.bf16 %v674, %v674
  %s676 = scalar_lea.vmem %s4, 12
  %677 = vst [vmem:[%s676] sm:$0xf] %v675
  %s678 = scalar_lea.vmem %s0, 64
  %v679 = vld [vmem:[%s678] sm:$0xff]
  %v680 = vld [vmem:[%s678 + $0x8] sm:$0xff]
  %v681 = vunpack.c.l.bf16 %v679
  %v682 = vunpack.c.h.bf16 %v679
  %v683 = vunpack.c.l.bf16 %v680
  %v684 = vunpack.c.h.bf16 %v680
  %685 = vmatprep.subr.bf16.mxu0 %v167
  %686 = vmatpush1.bf16.msra.mxu0 %v166
  %687 = vmatprep.subr.bf16.mxu0 %v171
  %688 = vmatpush1.bf16.msra.mxu0 %v170
  %689 = vmatprep.subr.bf16.mxu0 %v175
  %690 = vmatpush1.bf16.msra.mxu0 %v174
  %691 = vmatprep.subr.bf16.mxu0 %v179
  %692 = vmatpush1.bf16.msra.mxu0 %v178
  %693 = vmatprep.subr.bf16.mxu0 %v183
  %694 = vmatpush1.bf16.msra.mxu0 %v182
  %695 = vmatprep.subr.bf16.mxu0 %v187
  %696 = vmatpush1.bf16.msra.mxu0 %v186
  %697 = vmatprep.subr.bf16.mxu0 %v191
  %698 = vmatpush1.bf16.msra.mxu0 %v190
  %699 = vmatprep.subr.bf16.mxu0 %v195
  %700 = vmatpush1.bf16.msra.mxu0 %v194
  %701 = vmatprep.subr.bf16.mxu0 0
  %702 = vmatpush1.bf16.msra.mxu0 0
  %703 = vmatprep.subr.bf16.mxu0 0
  %704 = vmatpush1.bf16.msra.mxu0 0
  %705 = vmatprep.subr.bf16.mxu0 0
  %706 = vmatpush1.bf16.msra.mxu0 0
  %707 = vmatprep.subr.bf16.mxu0 0
  %708 = vmatpush1.bf16.msra.mxu0 0
  %709 = vmatprep.subr.bf16.mxu0 0
  %710 = vmatpush1.bf16.msra.mxu0 0
  %711 = vmatprep.subr.bf16.mxu0 0
  %712 = vmatpush1.bf16.msra.mxu0 0
  %713 = vmatprep.subr.bf16.mxu0 0
  %714 = vmatpush1.bf16.msra.mxu0 0
  %715 = vmatprep.subr.bf16.mxu0 0
  %716 = vmatpush1.bf16.msra.mxu0 0
  %717 = vmatprep.mubr.bf16.mxu0 0
  %718 = vmatmul.mubr.bf16.gmra.mrb[0].mxu0 %v675
  %v719 = vpop.f32.mrb[0].mxu0
  %v720 = vadd.f32 0.0, %v719
  %v721 = vpop.f32.mrb[0].mxu0
  %v722 = vadd.f32 0.0, %v721
  %v723 = vpop.f32.mrb[0].mxu0
  %v724 = vpop.f32.mrb[0].mxu0
  %725 = vdwg.mxu0
  %726 = vmatprep.subr.bf16.mxu0 %v169
  %727 = vmatpush1.bf16.msra.mxu0 %v168
  %728 = vmatprep.subr.bf16.mxu0 %v173
  %729 = vmatpush1.bf16.msra.mxu0 %v172
  %730 = vmatprep.subr.bf16.mxu0 %v177
  %731 = vmatpush1.bf16.msra.mxu0 %v176
  %732 = vmatprep.subr.bf16.mxu0 %v181
  %733 = vmatpush1.bf16.msra.mxu0 %v180
  %734 = vmatprep.subr.bf16.mxu0 %v185
  %735 = vmatpush1.bf16.msra.mxu0 %v184
  %736 = vmatprep.subr.bf16.mxu0 %v189
  %737 = vmatpush1.bf16.msra.mxu0 %v188
  %738 = vmatprep.subr.bf16.mxu0 %v193
  %739 = vmatpush1.bf16.msra.mxu0 %v192
  %740 = vmatprep.subr.bf16.mxu0 %v197
  %741 = vmatpush1.bf16.msra.mxu0 %v196
  %742 = vmatprep.subr.bf16.mxu0 0
  %743 = vmatpush1.bf16.msra.mxu0 0
  %744 = vmatprep.subr.bf16.mxu0 0
  %745 = vmatpush1.bf16.msra.mxu0 0
  %746 = vmatprep.subr.bf16.mxu0 0
  %747 = vmatpush1.bf16.msra.mxu0 0
  %748 = vmatprep.subr.bf16.mxu0 0
  %749 = vmatpush1.bf16.msra.mxu0 0
  %750 = vmatprep.subr.bf16.mxu0 0
  %751 = vmatpush1.bf16.msra.mxu0 0
  %752 = vmatprep.subr.bf16.mxu0 0
  %753 = vmatpush1.bf16.msra.mxu0 0
  %754 = vmatprep.subr.bf16.mxu0 0
  %755 = vmatpush1.bf16.msra.mxu0 0
  %756 = vmatprep.subr.bf16.mxu0 0
  %757 = vmatpush1.bf16.msra.mxu0 0
  %758 = vmatprep.mubr.bf16.mxu0 0
  %759 = vmatmul.mubr.bf16.gmra.mrb[0].mxu0 %v675
  %v760 = vpop.f32.mrb[0].mxu0
  %v761 = vadd.f32 0.0, %v760
  %v762 = vpop.f32.mrb[0].mxu0
  %v763 = vadd.f32 0.0, %v762
  %v764 = vpop.f32.mrb[0].mxu0
  %v765 = vpop.f32.mrb[0].mxu0
  %766 = vdwg.mxu0
  %v767 = vadd.f32 %v681, %v720
  %v768 = vadd.f32 %v682, %v722
  %v769 = vadd.f32 %v683, %v761
  %v770 = vadd.f32 %v684, %v763
  %v771 = vmul.f32 %v767, 0.5
  %v772 = vmul.f32 %v768, 0.5
  %v773 = vmul.f32 %v769, 0.5
  %v774 = vtanh.pop %v771
  %v775 = vtanh.pop %v772
  %v776 = vtanh.pop %v773
  %v777 = vmul.f32 %v774, 0.5
  %v778 = vmul.f32 %v775, 0.5
  %v779 = vmul.f32 %v776, 0.5
  %v780 = vadd.f32 %v777, 0.5
  %v781 = vadd.f32 %v778, 0.5
  %v782 = vadd.f32 %v779, 0.5
  %v783 = vtanh.pop %v770
  %v784 = vmul.f32 %v781, %v672
  %v785 = vmul.f32 %v780, %v783
  %v786 = vadd.f32 %v784, %v785
  %v787 = vtanh.pop %v786
  %v788 = vmul.f32 %v782, %v787
  %v789 = vpack.c.bf16 %v788, %v788
  %s790 = scalar_lea.vmem %s4, 16
  %791 = vst [vmem:[%s790] sm:$0xf] %v789
  %s792 = scalar_lea.vmem %s0, 80
  %v793 = vld [vmem:[%s792] sm:$0xff]
  %v794 = vld [vmem:[%s792 + $0x8] sm:$0xff]
  %v795 = vunpack.c.l.bf16 %v793
  %v796 = vunpack.c.h.bf16 %v793
  %v797 = vunpack.c.l.bf16 %v794
  %v798 = vunpack.c.h.bf16 %v794
  %799 = vmatprep.subr.bf16.mxu0 %v167
  %800 = vmatpush1.bf16.msra.mxu0 %v166
  %801 = vmatprep.subr.bf16.mxu0 %v171
  %802 = vmatpush1.bf16.msra.mxu0 %v170
  %803 = vmatprep.subr.bf16.mxu0 %v175
  %804 = vmatpush1.bf16.msra.mxu0 %v174
  %805 = vmatprep.subr.bf16.mxu0 %v179
  %806 = vmatpush1.bf16.msra.mxu0 %v178
  %807 = vmatprep.subr.bf16.mxu0 %v183
  %808 = vmatpush1.bf16.msra.mxu0 %v182
  %809 = vmatprep.subr.bf16.mxu0 %v187
  %810 = vmatpush1.bf16.msra.mxu0 %v186
  %811 = vmatprep.subr.bf16.mxu0 %v191
  %812 = vmatpush1.bf16.msra.mxu0 %v190
  %813 = vmatprep.subr.bf16.mxu0 %v195
  %814 = vmatpush1.bf16.msra.mxu0 %v194
  %815 = vmatprep.subr.bf16.mxu0 0
  %816 = vmatpush1.bf16.msra.mxu0 0
  %817 = vmatprep.subr.bf16.mxu0 0
  %818 = vmatpush1.bf16.msra.mxu0 0
  %819 = vmatprep.subr.bf16.mxu0 0
  %820 = vmatpush1.bf16.msra.mxu0 0
  %821 = vmatprep.subr.bf16.mxu0 0
  %822 = vmatpush1.bf16.msra.mxu0 0
  %823 = vmatprep.subr.bf16.mxu0 0
  %824 = vmatpush1.bf16.msra.mxu0 0
  %825 = vmatprep.subr.bf16.mxu0 0
  %826 = vmatpush1.bf16.msra.mxu0 0
  %827 = vmatprep.subr.bf16.mxu0 0
  %828 = vmatpush1.bf16.msra.mxu0 0
  %829 = vmatprep.subr.bf16.mxu0 0
  %830 = vmatpush1.bf16.msra.mxu0 0
  %831 = vmatprep.mubr.bf16.mxu0 0
  %832 = vmatmul.mubr.bf16.gmra.mrb[0].mxu0 %v789
  %v833 = vpop.f32.mrb[0].mxu0
  %v834 = vadd.f32 0.0, %v833
  %v835 = vpop.f32.mrb[0].mxu0
  %v836 = vadd.f32 0.0, %v835
  %v837 = vpop.f32.mrb[0].mxu0
  %v838 = vpop.f32.mrb[0].mxu0
  %839 = vdwg.mxu0
  %840 = vmatprep.subr.bf16.mxu0 %v169
  %841 = vmatpush1.bf16.msra.mxu0 %v168
  %842 = vmatprep.subr.bf16.mxu0 %v173
  %843 = vmatpush1.bf16.msra.mxu0 %v172
  %844 = vmatprep.subr.bf16.mxu0 %v177
  %845 = vmatpush1.bf16.msra.mxu0 %v176
  %846 = vmatprep.subr.bf16.mxu0 %v181
  %847 = vmatpush1.bf16.msra.mxu0 %v180
  %848 = vmatprep.subr.bf16.mxu0 %v185
  %849 = vmatpush1.bf16.msra.mxu0 %v184
  %850 = vmatprep.subr.bf16.mxu0 %v189
  %851 = vmatpush1.bf16.msra.mxu0 %v188
  %852 = vmatprep.subr.bf16.mxu0 %v193
  %853 = vmatpush1.bf16.msra.mxu0 %v192
  %854 = vmatprep.subr.bf16.mxu0 %v197
  %855 = vmatpush1.bf16.msra.mxu0 %v196
  %856 = vmatprep.subr.bf16.mxu0 0
  %857 = vmatpush1.bf16.msra.mxu0 0
  %858 = vmatprep.subr.bf16.mxu0 0
  %859 = vmatpush1.bf16.msra.mxu0 0
  %860 = vmatprep.subr.bf16.mxu0 0
  %861 = vmatpush1.bf16.msra.mxu0 0
  %862 = vmatprep.subr.bf16.mxu0 0
  %863 = vmatpush1.bf16.msra.mxu0 0
  %864 = vmatprep.subr.bf16.mxu0 0
  %865 = vmatpush1.bf16.msra.mxu0 0
  %866 = vmatprep.subr.bf16.mxu0 0
  %867 = vmatpush1.bf16.msra.mxu0 0
  %868 = vmatprep.subr.bf16.mxu0 0
  %869 = vmatpush1.bf16.msra.mxu0 0
  %870 = vmatprep.subr.bf16.mxu0 0
  %871 = vmatpush1.bf16.msra.mxu0 0
  %872 = vmatprep.mubr.bf16.mxu0 0
  %873 = vmatmul.mubr.bf16.gmra.mrb[0].mxu0 %v789
  %v874 = vpop.f32.mrb[0].mxu0
  %v875 = vadd.f32 0.0, %v874
  %v876 = vpop.f32.mrb[0].mxu0
  %v877 = vadd.f32 0.0, %v876
  %v878 = vpop.f32.mrb[0].mxu0
  %v879 = vpop.f32.mrb[0].mxu0
  %880 = vdwg.mxu0
  %v881 = vadd.f32 %v795, %v834
  %v882 = vadd.f32 %v796, %v836
  %v883 = vadd.f32 %v797, %v875
  %v884 = vadd.f32 %v798, %v877
  %v885 = vmul.f32 %v881, 0.5
  %v886 = vmul.f32 %v882, 0.5
  %v887 = vmul.f32 %v883, 0.5
  %v888 = vtanh.pop %v885
  %v889 = vtanh.pop %v886
  %v890 = vtanh.pop %v887
  %v891 = vmul.f32 %v888, 0.5
  %v892 = vmul.f32 %v889, 0.5
  %v893 = vmul.f32 %v890, 0.5
  %v894 = vadd.f32 %v891, 0.5
  %v895 = vadd.f32 %v892, 0.5
  %v896 = vadd.f32 %v893, 0.5
  %v897 = vtanh.pop %v884
  %v898 = vmul.f32 %v895, %v786
  %v899 = vmul.f32 %v894, %v897
  %v900 = vadd.f32 %v898, %v899
  %v901 = vtanh.pop %v900
  %v902 = vmul.f32 %v896, %v901
  %v903 = vpack.c.bf16 %v902, %v902
  %s904 = scalar_lea.vmem %s4, 20
  %905 = vst [vmem:[%s904] sm:$0xf] %v903
  %s906 = scalar_lea.vmem %s0, 96
  %v907 = vld [vmem:[%s906] sm:$0xff]
  %v908 = vld [vmem:[%s906 + $0x8] sm:$0xff]
  %v909 = vunpack.c.l.bf16 %v907
  %v910 = vunpack.c.h.bf16 %v907
  %v911 = vunpack.c.l.bf16 %v908
  %v912 = vunpack.c.h.bf16 %v908
  %913 = vmatprep.subr.bf16.mxu0 %v167
  %914 = vmatpush1.bf16.msra.mxu0 %v166
  %915 = vmatprep.subr.bf16.mxu0 %v171
  %916 = vmatpush1.bf16.msra.mxu0 %v170
  %917 = vmatprep.subr.bf16.mxu0 %v175
  %918 = vmatpush1.bf16.msra.mxu0 %v174
  %919 = vmatprep.subr.bf16.mxu0 %v179
  %920 = vmatpush1.bf16.msra.mxu0 %v178
  %921 = vmatprep.subr.bf16.mxu0 %v183
  %922 = vmatpush1.bf16.msra.mxu0 %v182
  %923 = vmatprep.subr.bf16.mxu0 %v187
  %924 = vmatpush1.bf16.msra.mxu0 %v186
  %925 = vmatprep.subr.bf16.mxu0 %v191
  %926 = vmatpush1.bf16.msra.mxu0 %v190
  %927 = vmatprep.subr.bf16.mxu0 %v195
  %928 = vmatpush1.bf16.msra.mxu0 %v194
  %929 = vmatprep.subr.bf16.mxu0 0
  %930 = vmatpush1.bf16.msra.mxu0 0
  %931 = vmatprep.subr.bf16.mxu0 0
  %932 = vmatpush1.bf16.msra.mxu0 0
  %933 = vmatprep.subr.bf16.mxu0 0
  %934 = vmatpush1.bf16.msra.mxu0 0
  %935 = vmatprep.subr.bf16.mxu0 0
  %936 = vmatpush1.bf16.msra.mxu0 0
  %937 = vmatprep.subr.bf16.mxu0 0
  %938 = vmatpush1.bf16.msra.mxu0 0
  %939 = vmatprep.subr.bf16.mxu0 0
  %940 = vmatpush1.bf16.msra.mxu0 0
  %941 = vmatprep.subr.bf16.mxu0 0
  %942 = vmatpush1.bf16.msra.mxu0 0
  %943 = vmatprep.subr.bf16.mxu0 0
  %944 = vmatpush1.bf16.msra.mxu0 0
  %945 = vmatprep.mubr.bf16.mxu0 0
  %946 = vmatmul.mubr.bf16.gmra.mrb[0].mxu0 %v903
  %v947 = vpop.f32.mrb[0].mxu0
  %v948 = vadd.f32 0.0, %v947
  %v949 = vpop.f32.mrb[0].mxu0
  %v950 = vadd.f32 0.0, %v949
  %v951 = vpop.f32.mrb[0].mxu0
  %v952 = vpop.f32.mrb[0].mxu0
  %953 = vdwg.mxu0
  %954 = vmatprep.subr.bf16.mxu0 %v169
  %955 = vmatpush1.bf16.msra.mxu0 %v168
  %956 = vmatprep.subr.bf16.mxu0 %v173
  %957 = vmatpush1.bf16.msra.mxu0 %v172
  %958 = vmatprep.subr.bf16.mxu0 %v177
  %959 = vmatpush1.bf16.msra.mxu0 %v176
  %960 = vmatprep.subr.bf16.mxu0 %v181
  %961 = vmatpush1.bf16.msra.mxu0 %v180
  %962 = vmatprep.subr.bf16.mxu0 %v185
  %963 = vmatpush1.bf16.msra.mxu0 %v184
  %964 = vmatprep.subr.bf16.mxu0 %v189
  %965 = vmatpush1.bf16.msra.mxu0 %v188
  %966 = vmatprep.subr.bf16.mxu0 %v193
  %967 = vmatpush1.bf16.msra.mxu0 %v192
  %968 = vmatprep.subr.bf16.mxu0 %v197
  %969 = vmatpush1.bf16.msra.mxu0 %v196
  %970 = vmatprep.subr.bf16.mxu0 0
  %971 = vmatpush1.bf16.msra.mxu0 0
  %972 = vmatprep.subr.bf16.mxu0 0
  %973 = vmatpush1.bf16.msra.mxu0 0
  %974 = vmatprep.subr.bf16.mxu0 0
  %975 = vmatpush1.bf16.msra.mxu0 0
  %976 = vmatprep.subr.bf16.mxu0 0
  %977 = vmatpush1.bf16.msra.mxu0 0
  %978 = vmatprep.subr.bf16.mxu0 0
  %979 = vmatpush1.bf16.msra.mxu0 0
  %980 = vmatprep.subr.bf16.mxu0 0
  %981 = vmatpush1.bf16.msra.mxu0 0
  %982 = vmatprep.subr.bf16.mxu0 0
  %983 = vmatpush1.bf16.msra.mxu0 0
  %984 = vmatprep.subr.bf16.mxu0 0
  %985 = vmatpush1.bf16.msra.mxu0 0
  %986 = vmatprep.mubr.bf16.mxu0 0
  %987 = vmatmul.mubr.bf16.gmra.mrb[0].mxu0 %v903
  %v988 = vpop.f32.mrb[0].mxu0
  %v989 = vadd.f32 0.0, %v988
  %v990 = vpop.f32.mrb[0].mxu0
  %v991 = vadd.f32 0.0, %v990
  %v992 = vpop.f32.mrb[0].mxu0
  %v993 = vpop.f32.mrb[0].mxu0
  %994 = vdwg.mxu0
  %v995 = vadd.f32 %v909, %v948
  %v996 = vadd.f32 %v910, %v950
  %v997 = vadd.f32 %v911, %v989
  %v998 = vadd.f32 %v912, %v991
  %v999 = vmul.f32 %v995, 0.5
  %v1000 = vmul.f32 %v996, 0.5
  %v1001 = vmul.f32 %v997, 0.5
  %v1002 = vtanh.pop %v999
  %v1003 = vtanh.pop %v1000
  %v1004 = vtanh.pop %v1001
  %v1005 = vmul.f32 %v1002, 0.5
  %v1006 = vmul.f32 %v1003, 0.5
  %v1007 = vmul.f32 %v1004, 0.5
  %v1008 = vadd.f32 %v1005, 0.5
  %v1009 = vadd.f32 %v1006, 0.5
  %v1010 = vadd.f32 %v1007, 0.5
  %v1011 = vtanh.pop %v998
  %v1012 = vmul.f32 %v1009, %v900
  %v1013 = vmul.f32 %v1008, %v1011
  %v1014 = vadd.f32 %v1012, %v1013
  %v1015 = vtanh.pop %v1014
  %v1016 = vmul.f32 %v1010, %v1015
  %v1017 = vpack.c.bf16 %v1016, %v1016
  %s1018 = scalar_lea.vmem %s4, 24
  %1019 = vst [vmem:[%s1018] sm:$0xf] %v1017
  %s1020 = scalar_lea.vmem %s0, 112
  %v1021 = vld [vmem:[%s1020] sm:$0xff]
  %v1022 = vld [vmem:[%s1020 + $0x8] sm:$0xff]
  %v1023 = vunpack.c.l.bf16 %v1021
  %v1024 = vunpack.c.h.bf16 %v1021
  %v1025 = vunpack.c.l.bf16 %v1022
  %v1026 = vunpack.c.h.bf16 %v1022
  %1027 = vmatprep.subr.bf16.mxu0 %v167
  %1028 = vmatpush1.bf16.msra.mxu0 %v166
  %1029 = vmatprep.subr.bf16.mxu0 %v171
  %1030 = vmatpush1.bf16.msra.mxu0 %v170
  %1031 = vmatprep.subr.bf16.mxu0 %v175
  %1032 = vmatpush1.bf16.msra.mxu0 %v174
  %1033 = vmatprep.subr.bf16.mxu0 %v179
  %1034 = vmatpush1.bf16.msra.mxu0 %v178
  %1035 = vmatprep.subr.bf16.mxu0 %v183
  %1036 = vmatpush1.bf16.msra.mxu0 %v182
  %1037 = vmatprep.subr.bf16.mxu0 %v187
  %1038 = vmatpush1.bf16.msra.mxu0 %v186
  %1039 = vmatprep.subr.bf16.mxu0 %v191
  %1040 = vmatpush1.bf16.msra.mxu0 %v190
  %1041 = vmatprep.subr.bf16.mxu0 %v195
  %1042 = vmatpush1.bf16.msra.mxu0 %v194
  %1043 = vmatprep.subr.bf16.mxu0 0
  %1044 = vmatpush1.bf16.msra.mxu0 0
  %1045 = vmatprep.subr.bf16.mxu0 0
  %1046 = vmatpush1.bf16.msra.mxu0 0
  %1047 = vmatprep.subr.bf16.mxu0 0
  %1048 = vmatpush1.bf16.msra.mxu0 0
  %1049 = vmatprep.subr.bf16.mxu0 0
  %1050 = vmatpush1.bf16.msra.mxu0 0
  %1051 = vmatprep.subr.bf16.mxu0 0
  %1052 = vmatpush1.bf16.msra.mxu0 0
  %1053 = vmatprep.subr.bf16.mxu0 0
  %1054 = vmatpush1.bf16.msra.mxu0 0
  %1055 = vmatprep.subr.bf16.mxu0 0
  %1056 = vmatpush1.bf16.msra.mxu0 0
  %1057 = vmatprep.subr.bf16.mxu0 0
  %1058 = vmatpush1.bf16.msra.mxu0 0
  %1059 = vmatprep.mubr.bf16.mxu0 0
  %1060 = vmatmul.mubr.bf16.gmra.mrb[0].mxu0 %v1017
  %v1061 = vpop.f32.mrb[0].mxu0
  %v1062 = vadd.f32 0.0, %v1061
  %v1063 = vpop.f32.mrb[0].mxu0
  %v1064 = vadd.f32 0.0, %v1063
  %v1065 = vpop.f32.mrb[0].mxu0
  %v1066 = vpop.f32.mrb[0].mxu0
  %1067 = vdwg.mxu0
  %1068 = vmatprep.subr.bf16.mxu0 %v169
  %1069 = vmatpush1.bf16.msra.mxu0 %v168
  %1070 = vmatprep.subr.bf16.mxu0 %v173
  %1071 = vmatpush1.bf16.msra.mxu0 %v172
  %1072 = vmatprep.subr.bf16.mxu0 %v177
  %1073 = vmatpush1.bf16.msra.mxu0 %v176
  %1074 = vmatprep.subr.bf16.mxu0 %v181
  %1075 = vmatpush1.bf16.msra.mxu0 %v180
  %1076 = vmatprep.subr.bf16.mxu0 %v185
  %1077 = vmatpush1.bf16.msra.mxu0 %v184
  %1078 = vmatprep.subr.bf16.mxu0 %v189
  %1079 = vmatpush1.bf16.msra.mxu0 %v188
  %1080 = vmatprep.subr.bf16.mxu0 %v193
  %1081 = vmatpush1.bf16.msra.mxu0 %v192
  %1082 = vmatprep.subr.bf16.mxu0 %v197
  %1083 = vmatpush1.bf16.msra.mxu0 %v196
  %1084 = vmatprep.subr.bf16.mxu0 0
  %1085 = vmatpush1.bf16.msra.mxu0 0
  %1086 = vmatprep.subr.bf16.mxu0 0
  %1087 = vmatpush1.bf16.msra.mxu0 0
  %1088 = vmatprep.subr.bf16.mxu0 0
  %1089 = vmatpush1.bf16.msra.mxu0 0
  %1090 = vmatprep.subr.bf16.mxu0 0
  %1091 = vmatpush1.bf16.msra.mxu0 0
  %1092 = vmatprep.subr.bf16.mxu0 0
  %1093 = vmatpush1.bf16.msra.mxu0 0
  %1094 = vmatprep.subr.bf16.mxu0 0
  %1095 = vmatpush1.bf16.msra.mxu0 0
  %1096 = vmatprep.subr.bf16.mxu0 0
  %1097 = vmatpush1.bf16.msra.mxu0 0
  %1098 = vmatprep.subr.bf16.mxu0 0
  %1099 = vmatpush1.bf16.msra.mxu0 0
  %1100 = vmatprep.mubr.bf16.mxu0 0
  %1101 = vmatmul.mubr.bf16.gmra.mrb[0].mxu0 %v1017
  %v1102 = vpop.f32.mrb[0].mxu0
  %v1103 = vadd.f32 0.0, %v1102
  %v1104 = vpop.f32.mrb[0].mxu0
  %v1105 = vadd.f32 0.0, %v1104
  %v1106 = vpop.f32.mrb[0].mxu0
  %v1107 = vpop.f32.mrb[0].mxu0
  %1108 = vdwg.mxu0
  %v1109 = vadd.f32 %v1023, %v1062
  %v1110 = vadd.f32 %v1024, %v1064
  %v1111 = vadd.f32 %v1025, %v1103
  %v1112 = vadd.f32 %v1026, %v1105
  %v1113 = vmul.f32 %v1109, 0.5
  %v1114 = vmul.f32 %v1110, 0.5
  %v1115 = vmul.f32 %v1111, 0.5
  %v1116 = vtanh.pop %v1113
  %v1117 = vtanh.pop %v1114
  %v1118 = vtanh.pop %v1115
  %v1119 = vmul.f32 %v1116, 0.5
  %v1120 = vmul.f32 %v1117, 0.5
  %v1121 = vmul.f32 %v1118, 0.5
  %v1122 = vadd.f32 %v1119, 0.5
  %v1123 = vadd.f32 %v1120, 0.5
  %v1124 = vadd.f32 %v1121, 0.5
  %v1125 = vtanh.pop %v1112
  %v1126 = vmul.f32 %v1123, %v1014
  %v1127 = vmul.f32 %v1122, %v1125
  %v1128 = vadd.f32 %v1126, %v1127
  %v1129 = vtanh.pop %v1128
  %v1130 = vmul.f32 %v1124, %v1129
  %v1131 = vpack.c.bf16 %v1130, %v1130
  %s1132 = scalar_lea.vmem %s4, 28
  %1133 = vst [vmem:[%s1132] sm:$0xf] %v1131
  %1134 = vst [vmem:[#allocation2] sm:$0xff] %v1130
  %1135 = vst [vmem:[#allocation3] sm:$0xff] %v1128
  %v1136 = vld [vmem:[#allocation2] sm:$0xff]
  %1137 = vst [vmem:[%s5] sm:$0xff] %v1136
  %v1138 = vld [vmem:[#allocation3] sm:$0xff]
  %1139 = vst [vmem:[%s6] sm:$0xff] %v1138
  // Predicated region
  $region22: #{recurrent_block_forward.1} parent=0 // pred_check
    _
  $region23: #{recurrent_block_forward.1} parent=0 // pred_check_branch
    %1141 = sbr.rel (0) target = $region25
  $region24: #{recurrent_block_forward.1} parent=0 // pred_region
    _
  $region25: #{recurrent_block_forward.1} parent=0 // pred_fallthru
    _
  // Predicated region
  $region26: #{recurrent_block_forward.1} parent=0 // pred_check
    _
  $region27: #{recurrent_block_forward.1} parent=0 // pred_check_branch
    %1143 = sbr.rel (0) target = $region29
  $region28: #{recurrent_block_forward.1} parent=0 // pred_region
    _
  $region29: #{recurrent_block_forward.1} parent=0 // pred_fallthru
    _
  // Predicated region
  $region30: #{recurrent_block_forward.1} parent=0 // pred_check
    _
  $region31: #{recurrent_block_forward.1} parent=0 // pred_check_branch
    %1145 = sbr.rel (0) target = $region33
  $region32: #{recurrent_block_forward.1} parent=0 // pred_region
    _
  $region33: #{recurrent_block_forward.1} parent=0 // pred_fallthru
    _
  // Predicated region
  $region34: #{recurrent_block_forward.1} parent=0 // pred_check
    _
  $region35: #{recurrent_block_forward.1} parent=0 // pred_check_branch
    %1147 = sbr.rel (0) target = $region37
  $region36: #{recurrent_block_forward.1} parent=0 // pred_region
    _
  $region37: #{recurrent_block_forward.1} parent=0 // pred_fallthru
    _
  // Predicated region
  $region38: #{recurrent_block_forward.1} parent=0 // pred_check
    _
  $region39: #{recurrent_block_forward.1} parent=0 // pred_check_branch
    %1149 = sbr.rel (0) target = $region41
  $region40: #{recurrent_block_forward.1} parent=0 // pred_region
    _
  $region41: #{recurrent_block_forward.1} parent=0 // pred_fallthru
    _
  // Predicated region
  $region42: #{recurrent_block_forward.1} parent=0 // pred_check
    _
  $region43: #{recurrent_block_forward.1} parent=0 // pred_check_branch
    %1151 = sbr.rel (0) target = $region45
  $region44: #{recurrent_block_forward.1} parent=0 // pred_region
    _
  $region45: #{recurrent_block_forward.1} parent=0 // pred_fallthru
    _

</llo_original>
